<compile_context>
chip_gen: v7x
topology: tpu7x:2x2x1
jax: 0.10.0
libtpu: 0.0.40
codegen_flags: <defaults>
</compile_context>

<pallas_src>
import functools

import jax
import jax.numpy as jnp
from jax import lax
from jax.experimental import pallas as pl
from jax.experimental.pallas import tpu as pltpu


def bottleneck_kernel(x_ref, w1_ref, s1_ref, b1_ref, w2_ref, s2_ref, b2_ref,
                      w3_ref, s3_ref, b3_ref, o_ref, y1_ref, *, H, W, PAD):
    """One batch element per grid step.

    x_ref : (1, H*W, Cin)          input image, pixel-major, channels on lanes
    w1_ref: (Cin, width)           1x1 conv #1 (pre-transposed, bf16)
    w2_ref: (9*width, width)       3x3 conv, taps stacked along K (bf16)
    w3_ref: (width, Cout)          1x1 conv #3 (bf16)
    s*_ref/b*_ref: (1, C)          folded BatchNorm scale / bias (f32)
    o_ref : (1, H*W, Cout)         output (Cout == Cin, residual add)
    y1_ref: (2*PAD + H*W, width)   f32 VMEM scratch: zero halos + stage-1 slab
    """
    HW = H * W
    width = w1_ref.shape[1]

    # Keep the scratch halo rows zero: they supply the 3x3 conv's zero padding
    # for out-of-range *row* taps.  Cheap (2*PAD rows), and re-done every step
    # so it stays correct when the batch axis is sharded across TensorCores
    # (each core owns a private scratch buffer).
    zeros_halo = jnp.zeros((PAD, width), jnp.float32)
    y1_ref[0:PAD, :] = zeros_halo
    y1_ref[PAD + HW:2 * PAD + HW, :] = zeros_halo

    x = x_ref[0, :, :]                                       # (H*W, Cin) f32

    # ---- Stage 1: 1x1 conv + bn1 + relu — one whole-image MXU matmul. ----
    y1 = jnp.dot(x.astype(jnp.bfloat16), w1_ref[...],
                 preferred_element_type=jnp.float32)         # (H*W, width)
    y1 = jnp.maximum(y1 * s1_ref[...] + b1_ref[...], 0.0)
    y1_ref[PAD:PAD + HW, :] = y1                             # aligned slab store

    # ---- Stage 2: 3x3 conv (padding=1) fused into ONE K=9*width matmul. ----
    # Each tap is a row-major flat shift of the stage-1 slab; left/right image
    # border wrap-around is removed with sublane masks, top/bottom rows read
    # the zero halos.
    col = lax.broadcasted_iota(jnp.int32, (HW, 1), 0) % W
    not_left = col != 0                                      # tap reads col w-1
    not_right = col != (W - 1)                               # tap reads col w+1

    taps = []
    for dy in range(3):
        for dx in range(3):
            shift = (dy - 1) * W + (dx - 1)
            t = y1_ref[PAD + shift:PAD + shift + HW, :]      # (H*W, width)
            if dx == 0:
                t = jnp.where(not_left, t, jnp.zeros_like(t))
            elif dx == 2:
                t = jnp.where(not_right, t, jnp.zeros_like(t))
            taps.append(t)
    t_all = jnp.concatenate(taps, axis=-1)                   # (H*W, 9*width)

    y2 = jnp.dot(t_all.astype(jnp.bfloat16), w2_ref[...],
                 preferred_element_type=jnp.float32)         # (H*W, width)
    y2 = jnp.maximum(y2 * s2_ref[...] + b2_ref[...], 0.0)

    # ---- Stage 3: 1x1 conv + bn3 + residual add + final relu. ----
    y3 = jnp.dot(y2.astype(jnp.bfloat16), w3_ref[...],
                 preferred_element_type=jnp.float32)         # (H*W, Cout)
    y3 = y3 * s3_ref[...] + b3_ref[...]
    o_ref[0, :, :] = jnp.maximum(y3 + x, 0.0).astype(o_ref.dtype)


def fold_bn(gamma, beta, mean, var, eps=1e-5):
    scale = gamma / jnp.sqrt(var + eps)
    bias = beta - mean * scale
    return scale, bias


@jax.jit
def bottleneck_pallas(x_nchw, w1, w2, w3, s1, b1, s2, b2, s3, b3):
    """x_nchw: (N, Cin, H, W) float32.  Conv weights in PyTorch OIHW layout."""
    N, Cin, H, W = x_nchw.shape
    width = w1.shape[0]
    Cout = w3.shape[0]
    assert Cin == Cout, "downsample=None requires inplanes == planes * expansion"
    HW = H * W
    PAD = ((W + 1 + 7) // 8) * 8          # halo rows: >= W+1 and sublane-aligned

    # NCHW -> (N, H*W, C): pixel-major rows, channels on the lane dimension.
    x_flat = jnp.transpose(x_nchw, (0, 2, 3, 1)).reshape(N, HW, Cin)

    # Pre-transpose + pre-cast weights so the kernel does bf16 (pixels, K) @ (K, C).
    w1k = jnp.transpose(w1[:, :, 0, 0], (1, 0)).astype(jnp.bfloat16)   # (Cin, width)
    w2k = jnp.concatenate(
        [jnp.transpose(w2[:, :, dy, dx], (1, 0))
         for dy in range(3) for dx in range(3)], axis=0
    ).astype(jnp.bfloat16)                                             # (9*width, width)
    w3k = jnp.transpose(w3[:, :, 0, 0], (1, 0)).astype(jnp.bfloat16)   # (width, Cout)

    s1k, b1k = s1.reshape(1, width), b1.reshape(1, width)
    s2k, b2k = s2.reshape(1, width), b2.reshape(1, width)
    s3k, b3k = s3.reshape(1, Cout), b3.reshape(1, Cout)

    full = lambda shape: pl.BlockSpec(shape, lambda n: (0,) * len(shape))
    kernel = functools.partial(bottleneck_kernel, H=H, W=W, PAD=PAD)

    out_flat = pl.pallas_call(
        kernel,
        out_shape=jax.ShapeDtypeStruct((N, HW, Cout), jnp.float32),
        grid=(N,),
        in_specs=[
            pl.BlockSpec((1, HW, Cin), lambda n: (n, 0, 0)),   # x (one image)
            full((Cin, width)),                                # w1
            full((1, width)), full((1, width)),                # bn1 scale/bias
            full((9 * width, width)),                          # w2 (taps stacked on K)
            full((1, width)), full((1, width)),                # bn2 scale/bias
            full((width, Cout)),                               # w3
            full((1, Cout)), full((1, Cout)),                  # bn3 scale/bias
        ],
        out_specs=pl.BlockSpec((1, HW, Cout), lambda n: (n, 0, 0)),
        scratch_shapes=[pltpu.VMEM((2 * PAD + HW, width), jnp.float32)],
        compiler_params=pltpu.CompilerParams(
            dimension_semantics=("parallel",)),
    )(x_flat, w1k, s1k, b1k, w2k, s2k, b2k, w3k, s3k, b3k)

    return jnp.transpose(out_flat.reshape(N, H, W, Cout), (0, 3, 1, 2))


def bottleneck_reference(x, w1, w2, w3, s1, b1, s2, b2, s3, b3):
    """Pure-JAX NCHW reference (mirrors the PyTorch module in eval mode)."""
    dn = ('NCHW', 'OIHW', 'NCHW')

    def affine(y, s, b):
        return y * s[None, :, None, None] + b[None, :, None, None]

    y = lax.conv_general_dilated(x, w1, (1, 1), 'VALID', dimension_numbers=dn)
    y = jax.nn.relu(affine(y, s1, b1))
    y = lax.conv_general_dilated(y, w2, (1, 1), ((1, 1), (1, 1)),
                                 dimension_numbers=dn)
    y = jax.nn.relu(affine(y, s2, b2))
    y = lax.conv_general_dilated(y, w3, (1, 1), 'VALID', dimension_numbers=dn)
    y = affine(y, s3, b3)
    return jax.nn.relu(y + x)


if __name__ == "__main__":
    # Small shapes consistent with Bottleneck(inplanes=32, planes=8):
    #   width = planes = 8, out channels = planes * 4 = 32 = inplanes.
    N, inplanes, H, W = 2, 32, 8, 8
    planes = 8
    width = planes
    cout = planes * 4

    key = jax.random.PRNGKey(0)
    ks = jax.random.split(key, 16)

    # Deterministic synthetic parameters (PyTorch OIHW conv layout).
    w1 = 0.1 * jax.random.normal(ks[0], (width, inplanes, 1, 1), jnp.float32)
    w2 = 0.1 * jax.random.normal(ks[1], (width, width, 3, 3), jnp.float32)
    w3 = 0.1 * jax.random.normal(ks[2], (cout, width, 1, 1), jnp.float32)

    def bn_params(k, c):
        kg, kb, km, kv = jax.random.split(k, 4)
        gamma = 0.5 + jax.random.uniform(kg, (c,), jnp.float32)
        beta = 0.1 * jax.random.normal(kb, (c,), jnp.float32)
        mean = 0.1 * jax.random.normal(km, (c,), jnp.float32)
        var = 0.5 + jax.random.uniform(kv, (c,), jnp.float32)
        return fold_bn(gamma, beta, mean, var)

    s1, b1 = bn_params(ks[3], width)
    s2, b2 = bn_params(ks[4], width)
    s3, b3 = bn_params(ks[5], cout)

    x = jax.random.normal(ks[6], (N, inplanes, H, W), jnp.float32)

    out = bottleneck_pallas(x, w1, w2, w3, s1, b1, s2, b2, s3, b3)
    out = jax.block_until_ready(out)

    ref = bottleneck_reference(x, w1, w2, w3, s1, b1, s2, b2, s3, b3)
    assert out.shape == (N, cout, H, W)
    # bf16 MXU operands vs an f32 reference -> relaxed tolerance.
    assert jnp.allclose(out, ref, atol=5e-2, rtol=5e-2), (
        float(jnp.max(jnp.abs(out - ref))))

    print("KERNEL_OK")
</pallas_src>

<mosaic_0001>
module attributes {stable_mosaic.version = 11 : i64} {
  func.func @bottleneck_kernel(%arg0: i32, %arg1: memref<1x64x32xf32, #tpu.memory_space<vmem>>, %arg2: memref<32x8xbf16, #tpu.memory_space<vmem>>, %arg3: memref<1x8xf32, #tpu.memory_space<vmem>>, %arg4: memref<1x8xf32, #tpu.memory_space<vmem>>, %arg5: memref<72x8xbf16, #tpu.memory_space<vmem>>, %arg6: memref<1x8xf32, #tpu.memory_space<vmem>>, %arg7: memref<1x8xf32, #tpu.memory_space<vmem>>, %arg8: memref<8x32xbf16, #tpu.memory_space<vmem>>, %arg9: memref<1x32xf32, #tpu.memory_space<vmem>>, %arg10: memref<1x32xf32, #tpu.memory_space<vmem>>, %arg11: memref<1x64x32xf32, #tpu.memory_space<vmem>>, %arg12: memref<96x8xf32, #tpu.memory_space<vmem>>) attributes {dimension_semantics = [#tpu.dimension_semantics<parallel>], iteration_bounds = array<i64: 2>, scalar_prefetch = 0 : i64, scratch_operands = 1 : i64, tpu.core_type = #tpu.core_type<tc>, window_params = [{transform_indices = @transform_0, window_bounds = array<i64: 1, 64, 32>}, {pipeline_mode = #tpu.pipeline_mode<synchronous>, transform_indices = @transform_1, window_bounds = array<i64: 32, 8>}, {pipeline_mode = #tpu.pipeline_mode<synchronous>, transform_indices = @transform_2, window_bounds = array<i64: 1, 8>}, {pipeline_mode = #tpu.pipeline_mode<synchronous>, transform_indices = @transform_3, window_bounds = array<i64: 1, 8>}, {pipeline_mode = #tpu.pipeline_mode<synchronous>, transform_indices = @transform_4, window_bounds = array<i64: 72, 8>}, {pipeline_mode = #tpu.pipeline_mode<synchronous>, transform_indices = @transform_5, window_bounds = array<i64: 1, 8>}, {pipeline_mode = #tpu.pipeline_mode<synchronous>, transform_indices = @transform_6, window_bounds = array<i64: 1, 8>}, {pipeline_mode = #tpu.pipeline_mode<synchronous>, transform_indices = @transform_7, window_bounds = array<i64: 8, 32>}, {pipeline_mode = #tpu.pipeline_mode<synchronous>, transform_indices = @transform_8, window_bounds = array<i64: 1, 32>}, {pipeline_mode = #tpu.pipeline_mode<synchronous>, transform_indices = @transform_9, window_bounds = array<i64: 1, 32>}, {transform_indices = @transform_10, window_bounds = array<i64: 1, 64, 32>}]} {
    %cst = arith.constant 0.000000e+00 : f32
    %0 = vector.broadcast %cst : f32 to vector<16x8xf32>
    %c0 = arith.constant 0 : index
    %c0_0 = arith.constant 0 : index
    %1 = vector.load %arg12[%c0, %c0_0] : memref<96x8xf32, #tpu.memory_space<vmem>>, vector<16x8xf32>
    tpu.vector_store %arg12[%c0, %c0_0], %0 {strides = array<i32>} : memref<96x8xf32, #tpu.memory_space<vmem>>, vector<16x8xf32>,
    %c80 = arith.constant 80 : index
    %c0_1 = arith.constant 0 : index
    %2 = vector.load %arg12[%c80, %c0_1] : memref<96x8xf32, #tpu.memory_space<vmem>>, vector<16x8xf32>
    tpu.vector_store %arg12[%c80, %c0_1], %0 {strides = array<i32>} : memref<96x8xf32, #tpu.memory_space<vmem>>, vector<16x8xf32>,
    %c0_2 = arith.constant 0 : index
    %c0_3 = arith.constant 0 : index
    %c0_4 = arith.constant 0 : index
    %3 = vector.load %arg1[%c0_2, %c0_3, %c0_4] : memref<1x64x32xf32, #tpu.memory_space<vmem>>, vector<1x64x32xf32>
    %4 = vector.shape_cast %3 : vector<1x64x32xf32> to vector<64x32xf32>
    %5 = arith.truncf %4 : vector<64x32xf32> to vector<64x32xbf16>
    %c0_5 = arith.constant 0 : index
    %c0_6 = arith.constant 0 : index
    %6 = vector.load %arg2[%c0_5, %c0_6] : memref<32x8xbf16, #tpu.memory_space<vmem>>, vector<32x8xbf16>
    %cst_7 = arith.constant dense<0.000000e+00> : vector<64x8xf32>
    %7 = tpu.matmul %5, %6, %cst_7 {dimension_numbers = #tpu.dot_dimension_numbers<[1], [0], [0], [1], [0, 0, 1, 1], [], []>} : vector<64x32xbf16>, vector<32x8xbf16>, vector<64x8xf32> -> vector<64x8xf32>
    %c0_8 = arith.constant 0 : index
    %c0_9 = arith.constant 0 : index
    %8 = vector.load %arg3[%c0_8, %c0_9] : memref<1x8xf32, #tpu.memory_space<vmem>>, vector<1x8xf32>
    %9 = vector.broadcast %8 : vector<1x8xf32> to vector<64x8xf32>
    %10 = arith.mulf %7, %9 : vector<64x8xf32>
    %c0_10 = arith.constant 0 : index
    %c0_11 = arith.constant 0 : index
    %11 = vector.load %arg4[%c0_10, %c0_11] : memref<1x8xf32, #tpu.memory_space<vmem>>, vector<1x8xf32>
    %12 = vector.broadcast %11 : vector<1x8xf32> to vector<64x8xf32>
    %13 = arith.addf %10, %12 : vector<64x8xf32>
    %cst_12 = arith.constant 0.000000e+00 : f32
    %14 = vector.broadcast %cst_12 : f32 to vector<64x8xf32>
    %15 = arith.maximumf %13, %14 : vector<64x8xf32>
    %c16 = arith.constant 16 : index
    %c0_13 = arith.constant 0 : index
    %16 = vector.load %arg12[%c16, %c0_13] : memref<96x8xf32, #tpu.memory_space<vmem>>, vector<64x8xf32>
    tpu.vector_store %arg12[%c16, %c0_13], %15 {strides = array<i32>} : memref<96x8xf32, #tpu.memory_space<vmem>>, vector<64x8xf32>,
    %17 = tpu.iota {dimensions = array<i32: 0>} : vector<64x1xi32>
    %c8_i32 = arith.constant 8 : i32
    %c0_i32 = arith.constant 0 : i32
    %18 = arith.cmpi eq, %c8_i32, %c0_i32 : i32
    %c1_i32 = arith.constant 1 : i32
    %19 = arith.select %18, %c1_i32, %c8_i32 : i32
    %20 = vector.broadcast %19 : i32 to vector<64x1xi32>
    %21 = arith.remsi %17, %20 : vector<64x1xi32>
    %c0_i32_14 = arith.constant 0 : i32
    %22 = vector.broadcast %c0_i32_14 : i32 to vector<64x1xi32>
    %23 = arith.cmpi ne, %21, %22 : vector<64x1xi32>
    %c0_i32_15 = arith.constant 0 : i32
    %24 = vector.broadcast %c0_i32_15 : i32 to vector<64x1xi32>
    %25 = arith.cmpi slt, %21, %24 : vector<64x1xi32>
    %c0_i32_16 = arith.constant 0 : i32
    %26 = arith.cmpi slt, %19, %c0_i32_16 : i32
    %27 = vector.broadcast %26 : i1 to vector<64x1xi1>
    %28 = vector.broadcast %27 : vector<64x1xi1> to vector<64x1xi1>
    %29 = arith.xori %25, %28 : vector<64x1xi1>
    %30 = arith.andi %29, %23 : vector<64x1xi1>
    %31 = vector.broadcast %19 : i32 to vector<64x1xi32>
    %32 = arith.addi %21, %31 : vector<64x1xi32>
    %33 = arith.select %30, %32, %21 : vector<64x1xi1>, vector<64x1xi32>
    %c0_i32_17 = arith.constant 0 : i32
    %34 = vector.broadcast %c0_i32_17 : i32 to vector<64x1xi32>
    %35 = arith.cmpi ne, %33, %34 : vector<64x1xi32>
    %c7_i32 = arith.constant 7 : i32
    %36 = vector.broadcast %c7_i32 : i32 to vector<64x1xi32>
    %37 = arith.cmpi ne, %33, %36 : vector<64x1xi32>
    %c7 = arith.constant 7 : index
    %c0_18 = arith.constant 0 : index
    %38 = vector.load %arg12[%c7, %c0_18] : memref<96x8xf32, #tpu.memory_space<vmem>>, vector<64x8xf32>
    %cst_19 = arith.constant 0.000000e+00 : f32
    %39 = vector.broadcast %cst_19 : f32 to vector<64x8xf32>
    %40 = vector.shape_cast %35 : vector<64x1xi1> to vector<64x1xi1>
    %41 = vector.broadcast %40 : vector<64x1xi1> to vector<64x8xi1>
    %42 = arith.select %41, %38, %39 : vector<64x8xi1>, vector<64x8xf32>
    %c8 = arith.constant 8 : index
    %c0_20 = arith.constant 0 : index
    %43 = vector.load %arg12[%c8, %c0_20] : memref<96x8xf32, #tpu.memory_space<vmem>>, vector<64x8xf32>
    %c9 = arith.constant 9 : index
    %c0_21 = arith.constant 0 : index
    %44 = vector.load %arg12[%c9, %c0_21] : memref<96x8xf32, #tpu.memory_space<vmem>>, vector<64x8xf32>
    %cst_22 = arith.constant 0.000000e+00 : f32
    %45 = vector.broadcast %cst_22 : f32 to vector<64x8xf32>
    %46 = vector.shape_cast %37 : vector<64x1xi1> to vector<64x1xi1>
    %47 = vector.broadcast %46 : vector<64x1xi1> to vector<64x8xi1>
    %48 = arith.select %47, %44, %45 : vector<64x8xi1>, vector<64x8xf32>
    %c15 = arith.constant 15 : index
    %c0_23 = arith.constant 0 : index
    %49 = vector.load %arg12[%c15, %c0_23] : memref<96x8xf32, #tpu.memory_space<vmem>>, vector<64x8xf32>
    %cst_24 = arith.constant 0.000000e+00 : f32
    %50 = vector.broadcast %cst_24 : f32 to vector<64x8xf32>
    %51 = vector.shape_cast %35 : vector<64x1xi1> to vector<64x1xi1>
    %52 = vector.broadcast %51 : vector<64x1xi1> to vector<64x8xi1>
    %53 = arith.select %52, %49, %50 : vector<64x8xi1>, vector<64x8xf32>
    %c16_25 = arith.constant 16 : index
    %c0_26 = arith.constant 0 : index
    %54 = vector.load %arg12[%c16_25, %c0_26] : memref<96x8xf32, #tpu.memory_space<vmem>>, vector<64x8xf32>
    %c17 = arith.constant 17 : index
    %c0_27 = arith.constant 0 : index
    %55 = vector.load %arg12[%c17, %c0_27] : memref<96x8xf32, #tpu.memory_space<vmem>>, vector<64x8xf32>
    %cst_28 = arith.constant 0.000000e+00 : f32
    %56 = vector.broadcast %cst_28 : f32 to vector<64x8xf32>
    %57 = vector.shape_cast %37 : vector<64x1xi1> to vector<64x1xi1>
    %58 = vector.broadcast %57 : vector<64x1xi1> to vector<64x8xi1>
    %59 = arith.select %58, %55, %56 : vector<64x8xi1>, vector<64x8xf32>
    %c23 = arith.constant 23 : index
    %c0_29 = arith.constant 0 : index
    %60 = vector.load %arg12[%c23, %c0_29] : memref<96x8xf32, #tpu.memory_space<vmem>>, vector<64x8xf32>
    %cst_30 = arith.constant 0.000000e+00 : f32
    %61 = vector.broadcast %cst_30 : f32 to vector<64x8xf32>
    %62 = vector.shape_cast %35 : vector<64x1xi1> to vector<64x1xi1>
    %63 = vector.broadcast %62 : vector<64x1xi1> to vector<64x8xi1>
    %64 = arith.select %63, %60, %61 : vector<64x8xi1>, vector<64x8xf32>
    %c24 = arith.constant 24 : index
    %c0_31 = arith.constant 0 : index
    %65 = vector.load %arg12[%c24, %c0_31] : memref<96x8xf32, #tpu.memory_space<vmem>>, vector<64x8xf32>
    %c25 = arith.constant 25 : index
    %c0_32 = arith.constant 0 : index
    %66 = vector.load %arg12[%c25, %c0_32] : memref<96x8xf32, #tpu.memory_space<vmem>>, vector<64x8xf32>
    %cst_33 = arith.constant 0.000000e+00 : f32
    %67 = vector.broadcast %cst_33 : f32 to vector<64x8xf32>
    %68 = vector.shape_cast %37 : vector<64x1xi1> to vector<64x1xi1>
    %69 = vector.broadcast %68 : vector<64x1xi1> to vector<64x8xi1>
    %70 = arith.select %69, %66, %67 : vector<64x8xi1>, vector<64x8xf32>
    %71 = tpu.concatenate %42, %43, %48, %53, %54, %59, %64, %65, %70 in 1 : vector<64x8xf32>, vector<64x8xf32>, vector<64x8xf32>, vector<64x8xf32>, vector<64x8xf32>, vector<64x8xf32>, vector<64x8xf32>, vector<64x8xf32>, vector<64x8xf32> -> vector<64x72xf32>
    %72 = arith.truncf %71 : vector<64x72xf32> to vector<64x72xbf16>
    %c0_34 = arith.constant 0 : index
    %c0_35 = arith.constant 0 : index
    %73 = vector.load %arg5[%c0_34, %c0_35] : memref<72x8xbf16, #tpu.memory_space<vmem>>, vector<72x8xbf16>
    %cst_36 = arith.constant dense<0.000000e+00> : vector<64x8xf32>
    %74 = tpu.matmul %72, %73, %cst_36 {dimension_numbers = #tpu.dot_dimension_numbers<[1], [0], [0], [1], [0, 0, 1, 1], [], []>} : vector<64x72xbf16>, vector<72x8xbf16>, vector<64x8xf32> -> vector<64x8xf32>
    %c0_37 = arith.constant 0 : index
    %c0_38 = arith.constant 0 : index
    %75 = vector.load %arg6[%c0_37, %c0_38] : memref<1x8xf32, #tpu.memory_space<vmem>>, vector<1x8xf32>
    %76 = vector.broadcast %75 : vector<1x8xf32> to vector<64x8xf32>
    %77 = arith.mulf %74, %76 : vector<64x8xf32>
    %c0_39 = arith.constant 0 : index
    %c0_40 = arith.constant 0 : index
    %78 = vector.load %arg7[%c0_39, %c0_40] : memref<1x8xf32, #tpu.memory_space<vmem>>, vector<1x8xf32>
    %79 = vector.broadcast %78 : vector<1x8xf32> to vector<64x8xf32>
    %80 = arith.addf %77, %79 : vector<64x8xf32>
    %cst_41 = arith.constant 0.000000e+00 : f32
    %81 = vector.broadcast %cst_41 : f32 to vector<64x8xf32>
    %82 = arith.maximumf %80, %81 : vector<64x8xf32>
    %83 = arith.truncf %82 : vector<64x8xf32> to vector<64x8xbf16>
    %c0_42 = arith.constant 0 : index
    %c0_43 = arith.constant 0 : index
    %84 = vector.load %arg8[%c0_42, %c0_43] : memref<8x32xbf16, #tpu.memory_space<vmem>>, vector<8x32xbf16>
    %cst_44 = arith.constant dense<0.000000e+00> : vector<64x32xf32>
    %85 = tpu.matmul %83, %84, %cst_44 {dimension_numbers = #tpu.dot_dimension_numbers<[1], [0], [0], [1], [0, 0, 1, 1], [], []>} : vector<64x8xbf16>, vector<8x32xbf16>, vector<64x32xf32> -> vector<64x32xf32>
    %c0_45 = arith.constant 0 : index
    %c0_46 = arith.constant 0 : index
    %86 = vector.load %arg9[%c0_45, %c0_46] : memref<1x32xf32, #tpu.memory_space<vmem>>, vector<1x32xf32>
    %87 = vector.broadcast %86 : vector<1x32xf32> to vector<64x32xf32>
    %88 = arith.mulf %85, %87 : vector<64x32xf32>
    %c0_47 = arith.constant 0 : index
    %c0_48 = arith.constant 0 : index
    %89 = vector.load %arg10[%c0_47, %c0_48] : memref<1x32xf32, #tpu.memory_space<vmem>>, vector<1x32xf32>
    %90 = vector.broadcast %89 : vector<1x32xf32> to vector<64x32xf32>
    %91 = arith.addf %88, %90 : vector<64x32xf32>
    %92 = arith.addf %91, %4 : vector<64x32xf32>
    %cst_49 = arith.constant 0.000000e+00 : f32
    %93 = vector.broadcast %cst_49 : f32 to vector<64x32xf32>
    %94 = arith.maximumf %92, %93 : vector<64x32xf32>
    %c0_50 = arith.constant 0 : index
    %c0_51 = arith.constant 0 : index
    %c0_52 = arith.constant 0 : index
    %95 = vector.load %arg11[%c0_50, %c0_51, %c0_52] : memref<1x64x32xf32, #tpu.memory_space<vmem>>, vector<1x64x32xf32>
    %96 = vector.shape_cast %95 : vector<1x64x32xf32> to vector<64x32xf32>
    %97 = vector.shape_cast %94 : vector<64x32xf32> to vector<1x64x32xf32>
    tpu.vector_store %arg11[%c0_50, %c0_51, %c0_52], %97 {strides = array<i32>} : memref<1x64x32xf32, #tpu.memory_space<vmem>>, vector<1x64x32xf32>,
    return
  }
  func.func @transform_0(%arg0: i32) -> (i32, i32, i32) {
    %c0_i32 = arith.constant 0 : i32
    %c0_i32_0 = arith.constant 0 : i32
    %c0_i32_1 = arith.constant 0 : i32
    return %arg0, %c0_i32, %c0_i32_0 : i32, i32, i32
  }
  func.func @transform_1(%arg0: i32) -> (i32, i32) {
    %c0_i32 = arith.constant 0 : i32
    %c0_i32_0 = arith.constant 0 : i32
    %c0_i32_1 = arith.constant 0 : i32
    return %c0_i32, %c0_i32_0 : i32, i32
  }
  func.func @transform_2(%arg0: i32) -> (i32, i32) {
    %c0_i32 = arith.constant 0 : i32
    %c0_i32_0 = arith.constant 0 : i32
    %c0_i32_1 = arith.constant 0 : i32
    return %c0_i32, %c0_i32_0 : i32, i32
  }
  func.func @transform_3(%arg0: i32) -> (i32, i32) {
    %c0_i32 = arith.constant 0 : i32
    %c0_i32_0 = arith.constant 0 : i32
    %c0_i32_1 = arith.constant 0 : i32
    return %c0_i32, %c0_i32_0 : i32, i32
  }
  func.func @transform_4(%arg0: i32) -> (i32, i32) {
    %c0_i32 = arith.constant 0 : i32
    %c0_i32_0 = arith.constant 0 : i32
    %c0_i32_1 = arith.constant 0 : i32
    return %c0_i32, %c0_i32_0 : i32, i32
  }
  func.func @transform_5(%arg0: i32) -> (i32, i32) {
    %c0_i32 = arith.constant 0 : i32
    %c0_i32_0 = arith.constant 0 : i32
    %c0_i32_1 = arith.constant 0 : i32
    return %c0_i32, %c0_i32_0 : i32, i32
  }
  func.func @transform_6(%arg0: i32) -> (i32, i32) {
    %c0_i32 = arith.constant 0 : i32
    %c0_i32_0 = arith.constant 0 : i32
    %c0_i32_1 = arith.constant 0 : i32
    return %c0_i32, %c0_i32_0 : i32, i32
  }
  func.func @transform_7(%arg0: i32) -> (i32, i32) {
    %c0_i32 = arith.constant 0 : i32
    %c0_i32_0 = arith.constant 0 : i32
    %c0_i32_1 = arith.constant 0 : i32
    return %c0_i32, %c0_i32_0 : i32, i32
  }
  func.func @transform_8(%arg0: i32) -> (i32, i32) {
    %c0_i32 = arith.constant 0 : i32
    %c0_i32_0 = arith.constant 0 : i32
    %c0_i32_1 = arith.constant 0 : i32
    return %c0_i32, %c0_i32_0 : i32, i32
  }
  func.func @transform_9(%arg0: i32) -> (i32, i32) {
    %c0_i32 = arith.constant 0 : i32
    %c0_i32_0 = arith.constant 0 : i32
    %c0_i32_1 = arith.constant 0 : i32
    return %c0_i32, %c0_i32_0 : i32, i32
  }
  func.func @transform_10(%arg0: i32) -> (i32, i32, i32) {
    %c0_i32 = arith.constant 0 : i32
    %c0_i32_0 = arith.constant 0 : i32
    %c0_i32_1 = arith.constant 0 : i32
    return %arg0, %c0_i32, %c0_i32_0 : i32, i32, i32
  }
}

</mosaic_0001>

<llo_original>
// kernel: bottleneck_pallas.1
$region0: #{bottleneck_pallas.1}
  #allocation0 [shape = 'u32[]', space=smem, size = 0x4, offset = 0x4, fixed_abs, tag = 'smem constant byte address 0x4 - core index']
  #allocation1 [shape = 'u32[144,128]{1,0:T(1,128)}', space=vmem, size = 0x12000, scoped, tag = 'internal scratch']
  #allocation2 [shape = 'f32[96,8]{1,0:T(8,128)}', space=vmem, size = 0xc000, scoped, tag = 'scratch operand']
  %s0 = inlined_call_operand.vmem [shape: f32[2,64,32], index: 0, kind: input, shape index: {}]
  %s1 = inlined_call_operand.vmem [shape: bf16[32,8], index: 1, kind: input, shape index: {}]
  %s2 = inlined_call_operand.vmem [shape: f32[1,8], index: 2, kind: input, shape index: {}]
  %s3 = inlined_call_operand.vmem [shape: f32[1,8], index: 3, kind: input, shape index: {}]
  %s4 = inlined_call_operand.vmem [shape: bf16[72,8], index: 4, kind: input, shape index: {}]
  %s5 = inlined_call_operand.vmem [shape: f32[1,8], index: 5, kind: input, shape index: {}]
  %s6 = inlined_call_operand.vmem [shape: f32[1,8], index: 6, kind: input, shape index: {}]
  %s7 = inlined_call_operand.vmem [shape: bf16[8,32], index: 7, kind: input, shape index: {}]
  %s8 = inlined_call_operand.vmem [shape: f32[1,32], index: 8, kind: input, shape index: {}]
  %s9 = inlined_call_operand.vmem [shape: f32[1,32], index: 9, kind: input, shape index: {}]
  %s10 = inlined_call_operand.hbm [shape: f32[2,64,32], index: 10, kind: output, shape index: {}]
  %s11 = sld [smem:[#allocation0]]
  $region73: #{bottleneck_pallas.1} parent=0
    _
  %s13 = ssub.s32 1, %s11
  %s14 = scalar_select 0, %s13, %s11
  $region1: #{bottleneck_pallas.1} parent=0
    #allocation3 [shape = 'u8[65536]{0}', space=vmem, size = 0x10000, scoped, tag = 'output window, operand 0']
    #allocation4 [shape = 's32[2]{0}', space=sflag, size = 0x8, scoped, tag = 'scoped memory for bottleneck_pallas.1']
    %15 = vsyncpa [#allocation4], 0
    %s16 = scalar_lea.sflag [#allocation4], 1
    %17 = vsyncpa %s16, 0
    loop: start=0, step=1, limit=4
    $region2: #{bottleneck_pallas.1} parent=1 // loop_pre_header
      _
    $region3: #{bottleneck_pallas.1} parent=1 // loop_header
      %s19 = sphi 0, %s23
      %p20 = scmp.ge.s32.totalorder %s19, 4
      %s29 = sphi 0, %s31
      %s32 = sphi 0, %s29
      %s33 = sphi 0, %s32
      %s49 = sphi 0, %s33
      %s53 = sphi 0, %s53
      %s55 = sphi 0, %s53
      %s56 = sphi 0, %s55
      %s70 = sphi 0, %s56
      %s74 = sphi 0, %s74
      %s76 = sphi 0, %s74
      %s77 = sphi 0, %s76
      %s91 = sphi 0, %s77
      %s95 = sphi 0, %s95
      %s97 = sphi 0, %s95
      %s98 = sphi 0, %s97
      %s112 = sphi 0, %s98
      %s116 = sphi 0, %s116
      %s118 = sphi 0, %s116
      %s119 = sphi 0, %s118
      %s133 = sphi 0, %s119
      %s137 = sphi 0, %s137
      %s139 = sphi 0, %s137
      %s140 = sphi 0, %s139
      %s154 = sphi 0, %s140
      %s158 = sphi 0, %s158
      %s160 = sphi 0, %s158
      %s161 = sphi 0, %s160
      %s175 = sphi 0, %s161
      %s179 = sphi 0, %s179
      %s181 = sphi 0, %s179
      %s182 = sphi 0, %s181
      %s196 = sphi 0, %s182
      %s200 = sphi 0, %s200
      %s202 = sphi 0, %s200
      %s203 = sphi 0, %s202
      %s217 = sphi 0, %s203
      %s221 = sphi 0, %s221
      %s223 = sphi 0, %s221
      %s224 = sphi 0, %s223
      %s238 = sphi 0, %s224
      %s244 = sphi 0, %s246
      %s247 = sphi 0, %s244
      %s248 = sphi 0, %s247
      %s264 = sphi 0, %s248
    $region4: #{bottleneck_pallas.1} parent=1 // loop_header_branch
      %22 = sbr.rel (%p20) target = $region8
    $region5: #{bottleneck_pallas.1} parent=1 // loop_body
      %s24 = ssub.s32 %s19, 1
      %s25 = ssub.s32 %s19, 2
      %s26 = sadd.s32 %s19, 1
      %s27 = ssub.s32 %s19, %s26
      %p28 = scmp.eq.s32.totalorder %s27, 0
      %s30 = sadd.s32 %s29, 1
      %s31 = scalar_select %p28, %s29, %s30
      %p34 = pneg %p28
      %p35 = scmp.eq.s32.totalorder %s19, 1
      %p36 = por %p34, %p35
      %p37 = scmp.ne.s32.totalorder %s29, %s32
      %p38 = scmp.eq.s32.totalorder %s19, 0
      %p39 = por %p37, %p38
      %p40 = scmp.ne.s32.totalorder %s29, %s32
      %p41 = scmp.eq.s32.totalorder %s24, 1
      %p42 = por %p40, %p41
      %p43 = scmp.ne.s32.totalorder %s32, %s33
      %p44 = scmp.eq.s32.totalorder %s24, 0
      %p45 = por %p43, %p44
      %p46 = scmp.ne.s32.totalorder %s32, %s33
      %p47 = scmp.eq.s32.totalorder %s25, 1
      %p48 = por %p46, %p47
      %p50 = scmp.ne.s32.totalorder %s33, %s49
      %p51 = scmp.eq.s32.totalorder %s25, 0
      %p52 = por %p50, %p51
      %s54 = sadd.s32 %s53, 1
      %p57 = scmp.eq.s32.totalorder %s19, 1
      %p58 = scmp.ne.s32.totalorder %s53, %s55
      %p59 = scmp.eq.s32.totalorder %s19, 0
      %p60 = por %p58, %p59
      %p61 = scmp.ne.s32.totalorder %s53, %s55
      %p62 = scmp.eq.s32.totalorder %s24, 1
      %p63 = por %p61, %p62
      %p64 = scmp.ne.s32.totalorder %s55, %s56
      %p65 = scmp.eq.s32.totalorder %s24, 0
      %p66 = por %p64, %p65
      %p67 = scmp.ne.s32.totalorder %s55, %s56
      %p68 = scmp.eq.s32.totalorder %s25, 1
      %p69 = por %p67, %p68
      %p71 = scmp.ne.s32.totalorder %s56, %s70
      %p72 = scmp.eq.s32.totalorder %s25, 0
      %p73 = por %p71, %p72
      %s75 = sadd.s32 %s74, 1
      %p78 = scmp.eq.s32.totalorder %s19, 1
      %p79 = scmp.ne.s32.totalorder %s74, %s76
      %p80 = scmp.eq.s32.totalorder %s19, 0
      %p81 = por %p79, %p80
      %p82 = scmp.ne.s32.totalorder %s74, %s76
      %p83 = scmp.eq.s32.totalorder %s24, 1
      %p84 = por %p82, %p83
      %p85 = scmp.ne.s32.totalorder %s76, %s77
      %p86 = scmp.eq.s32.totalorder %s24, 0
      %p87 = por %p85, %p86
      %p88 = scmp.ne.s32.totalorder %s76, %s77
      %p89 = scmp.eq.s32.totalorder %s25, 1
      %p90 = por %p88, %p89
      %p92 = scmp.ne.s32.totalorder %s77, %s91
      %p93 = scmp.eq.s32.totalorder %s25, 0
      %p94 = por %p92, %p93
      %s96 = sadd.s32 %s95, 1
      %p99 = scmp.eq.s32.totalorder %s19, 1
      %p100 = scmp.ne.s32.totalorder %s95, %s97
      %p101 = scmp.eq.s32.totalorder %s19, 0
      %p102 = por %p100, %p101
      %p103 = scmp.ne.s32.totalorder %s95, %s97
      %p104 = scmp.eq.s32.totalorder %s24, 1
      %p105 = por %p103, %p104
      %p106 = scmp.ne.s32.totalorder %s97, %s98
      %p107 = scmp.eq.s32.totalorder %s24, 0
      %p108 = por %p106, %p107
      %p109 = scmp.ne.s32.totalorder %s97, %s98
      %p110 = scmp.eq.s32.totalorder %s25, 1
      %p111 = por %p109, %p110
      %p113 = scmp.ne.s32.totalorder %s98, %s112
      %p114 = scmp.eq.s32.totalorder %s25, 0
      %p115 = por %p113, %p114
      %s117 = sadd.s32 %s116, 1
      %p120 = scmp.eq.s32.totalorder %s19, 1
      %p121 = scmp.ne.s32.totalorder %s116, %s118
      %p122 = scmp.eq.s32.totalorder %s19, 0
      %p123 = por %p121, %p122
      %p124 = scmp.ne.s32.totalorder %s116, %s118
      %p125 = scmp.eq.s32.totalorder %s24, 1
      %p126 = por %p124, %p125
      %p127 = scmp.ne.s32.totalorder %s118, %s119
      %p128 = scmp.eq.s32.totalorder %s24, 0
      %p129 = por %p127, %p128
      %p130 = scmp.ne.s32.totalorder %s118, %s119
      %p131 = scmp.eq.s32.totalorder %s25, 1
      %p132 = por %p130, %p131
      %p134 = scmp.ne.s32.totalorder %s119, %s133
      %p135 = scmp.eq.s32.totalorder %s25, 0
      %p136 = por %p134, %p135
      %s138 = sadd.s32 %s137, 1
      %p141 = scmp.eq.s32.totalorder %s19, 1
      %p142 = scmp.ne.s32.totalorder %s137, %s139
      %p143 = scmp.eq.s32.totalorder %s19, 0
      %p144 = por %p142, %p143
      %p145 = scmp.ne.s32.totalorder %s137, %s139
      %p146 = scmp.eq.s32.totalorder %s24, 1
      %p147 = por %p145, %p146
      %p148 = scmp.ne.s32.totalorder %s139, %s140
      %p149 = scmp.eq.s32.totalorder %s24, 0
      %p150 = por %p148, %p149
      %p151 = scmp.ne.s32.totalorder %s139, %s140
      %p152 = scmp.eq.s32.totalorder %s25, 1
      %p153 = por %p151, %p152
      %p155 = scmp.ne.s32.totalorder %s140, %s154
      %p156 = scmp.eq.s32.totalorder %s25, 0
      %p157 = por %p155, %p156
      %s159 = sadd.s32 %s158, 1
      %p162 = scmp.eq.s32.totalorder %s19, 1
      %p163 = scmp.ne.s32.totalorder %s158, %s160
      %p164 = scmp.eq.s32.totalorder %s19, 0
      %p165 = por %p163, %p164
      %p166 = scmp.ne.s32.totalorder %s158, %s160
      %p167 = scmp.eq.s32.totalorder %s24, 1
      %p168 = por %p166, %p167
      %p169 = scmp.ne.s32.totalorder %s160, %s161
      %p170 = scmp.eq.s32.totalorder %s24, 0
      %p171 = por %p169, %p170
      %p172 = scmp.ne.s32.totalorder %s160, %s161
      %p173 = scmp.eq.s32.totalorder %s25, 1
      %p174 = por %p172, %p173
      %p176 = scmp.ne.s32.totalorder %s161, %s175
      %p177 = scmp.eq.s32.totalorder %s25, 0
      %p178 = por %p176, %p177
      %s180 = sadd.s32 %s179, 1
      %p183 = scmp.eq.s32.totalorder %s19, 1
      %p184 = scmp.ne.s32.totalorder %s179, %s181
      %p185 = scmp.eq.s32.totalorder %s19, 0
      %p186 = por %p184, %p185
      %p187 = scmp.ne.s32.totalorder %s179, %s181
      %p188 = scmp.eq.s32.totalorder %s24, 1
      %p189 = por %p187, %p188
      %p190 = scmp.ne.s32.totalorder %s181, %s182
      %p191 = scmp.eq.s32.totalorder %s24, 0
      %p192 = por %p190, %p191
      %p193 = scmp.ne.s32.totalorder %s181, %s182
      %p194 = scmp.eq.s32.totalorder %s25, 1
      %p195 = por %p193, %p194
      %p197 = scmp.ne.s32.totalorder %s182, %s196
      %p198 = scmp.eq.s32.totalorder %s25, 0
      %p199 = por %p197, %p198
      %s201 = sadd.s32 %s200, 1
      %p204 = scmp.eq.s32.totalorder %s19, 1
      %p205 = scmp.ne.s32.totalorder %s200, %s202
      %p206 = scmp.eq.s32.totalorder %s19, 0
      %p207 = por %p205, %p206
      %p208 = scmp.ne.s32.totalorder %s200, %s202
      %p209 = scmp.eq.s32.totalorder %s24, 1
      %p210 = por %p208, %p209
      %p211 = scmp.ne.s32.totalorder %s202, %s203
      %p212 = scmp.eq.s32.totalorder %s24, 0
      %p213 = por %p211, %p212
      %p214 = scmp.ne.s32.totalorder %s202, %s203
      %p215 = scmp.eq.s32.totalorder %s25, 1
      %p216 = por %p214, %p215
      %p218 = scmp.ne.s32.totalorder %s203, %s217
      %p219 = scmp.eq.s32.totalorder %s25, 0
      %p220 = por %p218, %p219
      %s222 = sadd.s32 %s221, 1
      %p225 = scmp.eq.s32.totalorder %s19, 1
      %p226 = scmp.ne.s32.totalorder %s221, %s223
      %p227 = scmp.eq.s32.totalorder %s19, 0
      %p228 = por %p226, %p227
      %p229 = scmp.ne.s32.totalorder %s221, %s223
      %p230 = scmp.eq.s32.totalorder %s24, 1
      %p231 = por %p229, %p230
      %p232 = scmp.ne.s32.totalorder %s223, %s224
      %p233 = scmp.eq.s32.totalorder %s24, 0
      %p234 = por %p232, %p233
      %p235 = scmp.ne.s32.totalorder %s223, %s224
      %p236 = scmp.eq.s32.totalorder %s25, 1
      %p237 = por %p235, %p236
      %p239 = scmp.ne.s32.totalorder %s224, %s238
      %p240 = scmp.eq.s32.totalorder %s25, 0
      %p241 = por %p239, %p240
      %s242 = ssub.s32 %s19, %s26
      %p243 = scmp.eq.s32.totalorder %s242, 0
      %s245 = sadd.s32 %s244, 1
      %s246 = scalar_select %p243, %s244, %s245
      %p249 = pneg %p243
      %p250 = scmp.eq.s32.totalorder %s19, 1
      %p251 = por %p249, %p250
      %p252 = scmp.ne.s32.totalorder %s244, %s247
      %p253 = scmp.eq.s32.totalorder %s19, 0
      %p254 = por %p252, %p253
      %p255 = scmp.ne.s32.totalorder %s244, %s247
      %p256 = scmp.eq.s32.totalorder %s24, 1
      %p257 = por %p255, %p256
      %p258 = scmp.ne.s32.totalorder %s247, %s248
      %p259 = scmp.eq.s32.totalorder %s24, 0
      %p260 = por %p258, %p259
      %p261 = scmp.ne.s32.totalorder %s247, %s248
      %p262 = scmp.eq.s32.totalorder %s25, 1
      %p263 = por %p261, %p262
      %p265 = scmp.ne.s32.totalorder %s248, %s264
      %p266 = scmp.eq.s32.totalorder %s25, 0
      %p267 = por %p265, %p266
      %p268 = scmp.le.s32.totalorder 1, %s19
      %p269 = scmp.lt.s32.totalorder %s19, 3
      %p270 = pnand %p268, %p269
      %p271 = pneg %p270
      // Predicated region
      $region9: #{bottleneck_pallas.1} parent=5 // pred_check
        _
      $region10: #{bottleneck_pallas.1} parent=5 // pred_check_branch
        %273 = sbr.rel (%p270) target = $region12
      $region11: #{bottleneck_pallas.1} parent=5 // pred_region
        %s274 = ssub.s32 %s19, 1
        // Predicated region
        $region13: #{bottleneck_pallas.1} parent=11 // pred_check
          %p275 = pneg %p66
        $region14: #{bottleneck_pallas.1} parent=11 // pred_check_branch
          %277 = sbr.rel (%p275) target = $region16
        $region15: #{bottleneck_pallas.1} parent=11 // pred_region
          _
        $region16: #{bottleneck_pallas.1} parent=11 // pred_fallthru
          _
        // Predicated region
        $region17: #{bottleneck_pallas.1} parent=11 // pred_check
          %p278 = pneg %p87
        $region18: #{bottleneck_pallas.1} parent=11 // pred_check_branch
          %280 = sbr.rel (%p278) target = $region20
        $region19: #{bottleneck_pallas.1} parent=11 // pred_region
          _
        $region20: #{bottleneck_pallas.1} parent=11 // pred_fallthru
          _
        // Predicated region
        $region21: #{bottleneck_pallas.1} parent=11 // pred_check
          %p281 = pneg %p108
        $region22: #{bottleneck_pallas.1} parent=11 // pred_check_branch
          %283 = sbr.rel (%p281) target = $region24
        $region23: #{bottleneck_pallas.1} parent=11 // pred_region
          _
        $region24: #{bottleneck_pallas.1} parent=11 // pred_fallthru
          _
        // Predicated region
        $region25: #{bottleneck_pallas.1} parent=11 // pred_check
          %p284 = pneg %p129
        $region26: #{bottleneck_pallas.1} parent=11 // pred_check_branch
          %286 = sbr.rel (%p284) target = $region28
        $region27: #{bottleneck_pallas.1} parent=11 // pred_region
          _
        $region28: #{bottleneck_pallas.1} parent=11 // pred_fallthru
          _
        // Predicated region
        $region29: #{bottleneck_pallas.1} parent=11 // pred_check
          %p287 = pneg %p150
        $region30: #{bottleneck_pallas.1} parent=11 // pred_check_branch
          %289 = sbr.rel (%p287) target = $region32
        $region31: #{bottleneck_pallas.1} parent=11 // pred_region
          _
        $region32: #{bottleneck_pallas.1} parent=11 // pred_fallthru
          _
        // Predicated region
        $region33: #{bottleneck_pallas.1} parent=11 // pred_check
          %p290 = pneg %p171
        $region34: #{bottleneck_pallas.1} parent=11 // pred_check_branch
          %292 = sbr.rel (%p290) target = $region36
        $region35: #{bottleneck_pallas.1} parent=11 // pred_region
          _
        $region36: #{bottleneck_pallas.1} parent=11 // pred_fallthru
          _
        // Predicated region
        $region37: #{bottleneck_pallas.1} parent=11 // pred_check
          %p293 = pneg %p192
        $region38: #{bottleneck_pallas.1} parent=11 // pred_check_branch
          %295 = sbr.rel (%p293) target = $region40
        $region39: #{bottleneck_pallas.1} parent=11 // pred_region
          _
        $region40: #{bottleneck_pallas.1} parent=11 // pred_fallthru
          _
        // Predicated region
        $region41: #{bottleneck_pallas.1} parent=11 // pred_check
          %p296 = pneg %p213
        $region42: #{bottleneck_pallas.1} parent=11 // pred_check_branch
          %298 = sbr.rel (%p296) target = $region44
        $region43: #{bottleneck_pallas.1} parent=11 // pred_region
          _
        $region44: #{bottleneck_pallas.1} parent=11 // pred_fallthru
          _
        // Predicated region
        $region45: #{bottleneck_pallas.1} parent=11 // pred_check
          %p299 = pneg %p234
        $region46: #{bottleneck_pallas.1} parent=11 // pred_check_branch
          %301 = sbr.rel (%p299) target = $region48
        $region47: #{bottleneck_pallas.1} parent=11 // pred_region
          _
        $region48: #{bottleneck_pallas.1} parent=11 // pred_fallthru
          _
      $region12: #{bottleneck_pallas.1} parent=5 // pred_fallthru
        _
      %p302 = scmp.lt.s32.totalorder %s19, 2
      // Predicated region
      $region49: #{bottleneck_pallas.1} parent=5 // pred_check
        %p303 = pneg %p302
      $region50: #{bottleneck_pallas.1} parent=5 // pred_check_branch
        %305 = sbr.rel (%p303) target = $region52
      $region51: #{bottleneck_pallas.1} parent=5 // pred_region
        // Predicated region
        $region53: #{bottleneck_pallas.1} parent=51 // pred_check
          %p306 = pneg %p39
        $region54: #{bottleneck_pallas.1} parent=51 // pred_check_branch
          %308 = sbr.rel (%p306) target = $region56
        $region55: #{bottleneck_pallas.1} parent=51 // pred_region
          %p309 = scmp.lt.s32.totalorder %s19, 1
          %s310 = scalar_select %p309, %s19, 1
          %s311 = smul.addr %s310, 8
          %s312 = smul.addr %s311, 8
          %s313 = scalar_lea.vmem %s0, %s312
        $region56: #{bottleneck_pallas.1} parent=51 // pred_fallthru
          _
      $region52: #{bottleneck_pallas.1} parent=5 // pred_fallthru
        _
      %p314 = scmp.le.s32.totalorder 1, %s19
      %p315 = scmp.lt.s32.totalorder %s19, 3
      %p316 = pnand %p314, %p315
      %p317 = pneg %p316
      // Predicated region
      $region57: #{bottleneck_pallas.1} parent=5 // pred_check
        _
      $region58: #{bottleneck_pallas.1} parent=5 // pred_check_branch
        %319 = sbr.rel (%p316) target = $region60
      $region59: #{bottleneck_pallas.1} parent=5 // pred_region
        %s320 = ssub.s32 %s19, 1
        %p321 = scmp.lt.s32.totalorder %s24, 1
        %s322 = scalar_select %p321, %s24, 1
        %s323 = smul.addr %s322, 8
        %s324 = smul.addr %s323, 8
        %s325 = scalar_lea.vmem %s0, %s324
        %p326 = pneg %p45
        %p327 = pneg %p42
        %p328 = pneg %p66
        %p329 = pneg %p63
        %p330 = pneg %p87
        %p331 = pneg %p84
        %p332 = pneg %p108
        %p333 = pneg %p105
        %p334 = pneg %p129
        %p335 = pneg %p126
        %p336 = pneg %p150
        %p337 = pneg %p147
        %p338 = pneg %p171
        %p339 = pneg %p168
        %p340 = pneg %p192
        %p341 = pneg %p189
        %p342 = pneg %p213
        %p343 = pneg %p210
        %p344 = pneg %p234
        %p345 = pneg %p231
        %p346 = pneg %p260
        %p347 = pneg %p257
        %s348 = sand.u32 %s247, 1
        %s349 = scalar_lea.sflag [#allocation4], %s348
        %s350 = sand.u32 %s247, 1
        %s351 = smul.addr %s350, 64
        %s352 = scalar_lea.vmem [#allocation3], %s351
        %p353 = scmp.lt.s32.totalorder %s24, 1
        %s354 = scalar_select %p353, %s24, 1
        %s355 = smul.addr %s354, 8
        %s356 = smul.addr %s355, 8
        %s357 = scalar_lea.vmem %s0, %s356
        %vm359 = vcmask 64512
        %360 = vst.msk [vmem:[#allocation2] sm:$0xff] %vm359, 0.0
        %361 = vst.msk [vmem:[#allocation2 + $0x8] sm:$0xff] %vm359, 0.0
        %362 = vst.msk [vmem:[#allocation2 + $0x50] sm:$0xff] %vm359, 0.0
        %363 = vst.msk [vmem:[#allocation2 + $0x58] sm:$0xff] %vm359, 0.0
        %v364 = vld [vmem:[%s357] sm:$0xff]
        %v365 = vld [vmem:[%s357 + $0x8] sm:$0xff]
        %v366 = vld [vmem:[%s357 + $0x10] sm:$0xff]
        %v367 = vld [vmem:[%s357 + $0x18] sm:$0xff]
        %v368 = vld [vmem:[%s357 + $0x20] sm:$0xff]
        %v369 = vld [vmem:[%s357 + $0x28] sm:$0xff]
        %v370 = vld [vmem:[%s357 + $0x30] sm:$0xff]
        %v371 = vld [vmem:[%s357 + $0x38] sm:$0xff]
        %v372 = vpack.c.bf16 %v365, %v364
        %v373 = vpack.c.bf16 %v367, %v366
        %v374 = vpack.c.bf16 %v369, %v368
        %v375 = vpack.c.bf16 %v371, %v370
        %v376 = vld [vmem:[%s1] sm:$0xf]
        %v377 = vld [vmem:[%s1 + $0x4] sm:$0xf]
        %v378 = vld [vmem:[%s1 + $0x8] sm:$0xf]
        %v379 = vld [vmem:[%s1 + $0xc] sm:$0xf]
        %v384 = vunpack.c.l.b16 %v376
        %v385 = vunpack.c.l.b16 %v377
        %v386 = vunpack.c.l.b16 %v378
        %v387 = vunpack.c.l.b16 %v379
        %v388 = vpack.c.b16 %v385, %v384
        %v389 = vpack.c.b16 %v387, %v386
        %vm392 = vcmask 261120
        %v394 = vsel %vm392, %v372, 0
        %v397 = vsel %vm392, %v373, 0
        %v400 = vsel %vm392, %v374, 0
        %v403 = vsel %vm392, %v375, 0
        %405 = vmatprep.subr.bf16.mxu0 0
        %406 = vmatpush1.bf16.msra.mxu0 %v388
        %407 = vmatprep.subr.bf16.mxu0 0
        %408 = vmatpush1.bf16.msra.mxu0 %v389
        %409 = vmatprep.subr.bf16.mxu0 0
        %410 = vmatpush1.bf16.msra.mxu0 0
        %411 = vmatprep.subr.bf16.mxu0 0
        %412 = vmatpush1.bf16.msra.mxu0 0
        %413 = vmatprep.subr.bf16.mxu0 0
        %414 = vmatpush1.bf16.msra.mxu0 0
        %415 = vmatprep.subr.bf16.mxu0 0
        %416 = vmatpush1.bf16.msra.mxu0 0
        %417 = vmatprep.subr.bf16.mxu0 0
        %418 = vmatpush1.bf16.msra.mxu0 0
        %419 = vmatprep.subr.bf16.mxu0 0
        %420 = vmatpush1.bf16.msra.mxu0 0
        %421 = vmatprep.subr.bf16.mxu0 0
        %422 = vmatpush1.bf16.msra.mxu0 0
        %423 = vmatprep.subr.bf16.mxu0 0
        %424 = vmatpush1.bf16.msra.mxu0 0
        %425 = vmatprep.subr.bf16.mxu0 0
        %426 = vmatpush1.bf16.msra.mxu0 0
        %427 = vmatprep.subr.bf16.mxu0 0
        %428 = vmatpush1.bf16.msra.mxu0 0
        %429 = vmatprep.subr.bf16.mxu0 0
        %430 = vmatpush1.bf16.msra.mxu0 0
        %431 = vmatprep.subr.bf16.mxu0 0
        %432 = vmatpush1.bf16.msra.mxu0 0
        %433 = vmatprep.subr.bf16.mxu0 0
        %434 = vmatpush1.bf16.msra.mxu0 0
        %435 = vmatprep.subr.bf16.mxu0 0
        %436 = vmatpush1.bf16.msra.mxu0 0
        %437 = vmatprep.mubr.bf16.mxu0 0
        %438 = vmatmul.mubr.bf16.gmra.mrb[0].mxu0 %v394
        %v439 = vpop.f32.mrb[0].mxu0
        %v440 = vadd.f32 0.0, %v439
        %v441 = vpop.f32.mrb[0].mxu0
        %v442 = vpop.f32.mrb[0].mxu0
        %v443 = vadd.f32 0.0, %v442
        %v444 = vpop.f32.mrb[0].mxu0
        %445 = vmatprep.mubr.bf16.mxu0 0
        %446 = vmatmul.mubr.bf16.gmra.mrb[0].mxu0 %v397
        %v447 = vpop.f32.mrb[0].mxu0
        %v448 = vadd.f32 0.0, %v447
        %v449 = vpop.f32.mrb[0].mxu0
        %v450 = vpop.f32.mrb[0].mxu0
        %v451 = vadd.f32 0.0, %v450
        %v452 = vpop.f32.mrb[0].mxu0
        %453 = vmatprep.mubr.bf16.mxu0 0
        %454 = vmatmul.mubr.bf16.gmra.mrb[0].mxu0 %v400
        %v455 = vpop.f32.mrb[0].mxu0
        %v456 = vadd.f32 0.0, %v455
        %v457 = vpop.f32.mrb[0].mxu0
        %v458 = vpop.f32.mrb[0].mxu0
        %v459 = vadd.f32 0.0, %v458
        %v460 = vpop.f32.mrb[0].mxu0
        %461 = vmatprep.mubr.bf16.mxu0 0
        %462 = vmatmul.mubr.bf16.gmra.mrb[0].mxu0 %v403
        %v463 = vpop.f32.mrb[0].mxu0
        %v464 = vadd.f32 0.0, %v463
        %v465 = vpop.f32.mrb[0].mxu0
        %v466 = vpop.f32.mrb[0].mxu0
        %v467 = vadd.f32 0.0, %v466
        %v468 = vpop.f32.mrb[0].mxu0
        %469 = vdwg.mxu0
        %v470 = vld [vmem:[%s2] sm:$0x1]
        %v472 = vlaneseq
        %v473 = vshrl.u32 %v472, 7
        %v474 = vsub.s32 0, %v473
        %v475 = vrot.slane %v470, %v474
        %v477 = vmul.f32 %v440, %v475
        %v478 = vmul.f32 %v443, %v475
        %v479 = vmul.f32 %v448, %v475
        %v480 = vmul.f32 %v451, %v475
        %v481 = vmul.f32 %v456, %v475
        %v482 = vmul.f32 %v459, %v475
        %v483 = vmul.f32 %v464, %v475
        %v484 = vmul.f32 %v467, %v475
        %v485 = vld [vmem:[%s3] sm:$0x1]
        %v487 = vlaneseq
        %v488 = vshrl.u32 %v487, 7
        %v489 = vsub.s32 0, %v488
        %v490 = vrot.slane %v485, %v489
        %v492 = vadd.f32 %v477, %v490
        %v493 = vadd.f32 %v478, %v490
        %v494 = vadd.f32 %v479, %v490
        %v495 = vadd.f32 %v480, %v490
        %v496 = vadd.f32 %v481, %v490
        %v497 = vadd.f32 %v482, %v490
        %v498 = vadd.f32 %v483, %v490
        %v499 = vadd.f32 %v484, %v490
        %v500 = vmax.f32 %v492, 0.0
        %v501 = vmax.f32 %v493, 0.0
        %v502 = vmax.f32 %v494, 0.0
        %v503 = vmax.f32 %v495, 0.0
        %v504 = vmax.f32 %v496, 0.0
        %v505 = vmax.f32 %v497, 0.0
        %v506 = vmax.f32 %v498, 0.0
        %v507 = vmax.f32 %v499, 0.0
        %508 = vst.msk [vmem:[#allocation2 + $0x10] sm:$0xff] %vm359, %v500
        %509 = vst.msk [vmem:[#allocation2 + $0x18] sm:$0xff] %vm359, %v501
        %510 = vst.msk [vmem:[#allocation2 + $0x20] sm:$0xff] %vm359, %v502
        %511 = vst.msk [vmem:[#allocation2 + $0x28] sm:$0xff] %vm359, %v503
        %512 = vst.msk [vmem:[#allocation2 + $0x30] sm:$0xff] %vm359, %v504
        %513 = vst.msk [vmem:[#allocation2 + $0x38] sm:$0xff] %vm359, %v505
        %514 = vst.msk [vmem:[#allocation2 + $0x40] sm:$0xff] %vm359, %v506
        %515 = vst.msk [vmem:[#allocation2 + $0x48] sm:$0xff] %vm359, %v507
        %v516 = vlaneseq
        %v517 = vshrl.u32 %v516, 7
        %v518 = vadd.s32 %v517, 8
        %v519 = vadd.s32 %v517, 16
        %v520 = vadd.s32 %v517, 24
        %v521 = vadd.s32 %v517, 32
        %v522 = vadd.s32 %v517, 40
        %v523 = vadd.s32 %v517, 48
        %v524 = vadd.s32 %v517, 56
        %vm525 = vcmp.lt.s32.totalorder %v517, 0
        %v526 = vsub.s32 0, %v517
        %v527 = vsel %vm525, %v526, %v517
        %v528 = vshrl.u32 %v527, 3
        %v529 = vand.u32 %v527, 7
        %v530 = vsub.s32 0, %v529
        %v531 = vsel %vm525, %v530, %v529
        %vm532 = vcmp.lt.s32.totalorder %v518, 0
        %v533 = vsub.s32 0, %v518
        %v534 = vsel %vm532, %v533, %v518
        %v535 = vshrl.u32 %v534, 3
        %v536 = vand.u32 %v534, 7
        %v537 = vsub.s32 0, %v536
        %v538 = vsel %vm532, %v537, %v536
        %vm539 = vcmp.lt.s32.totalorder %v519, 0
        %v540 = vsub.s32 0, %v519
        %v541 = vsel %vm539, %v540, %v519
        %v542 = vshrl.u32 %v541, 3
        %v543 = vand.u32 %v541, 7
        %v544 = vsub.s32 0, %v543
        %v545 = vsel %vm539, %v544, %v543
        %vm546 = vcmp.lt.s32.totalorder %v520, 0
        %v547 = vsub.s32 0, %v520
        %v548 = vsel %vm546, %v547, %v520
        %v549 = vshrl.u32 %v548, 3
        %v550 = vand.u32 %v548, 7
        %v551 = vsub.s32 0, %v550
        %v552 = vsel %vm546, %v551, %v550
        %vm553 = vcmp.lt.s32.totalorder %v521, 0
        %v554 = vsub.s32 0, %v521
        %v555 = vsel %vm553, %v554, %v521
        %v556 = vshrl.u32 %v555, 3
        %v557 = vand.u32 %v555, 7
        %v558 = vsub.s32 0, %v557
        %v559 = vsel %vm553, %v558, %v557
        %vm560 = vcmp.lt.s32.totalorder %v522, 0
        %v561 = vsub.s32 0, %v522
        %v562 = vsel %vm560, %v561, %v522
        %v563 = vshrl.u32 %v562, 3
        %v564 = vand.u32 %v562, 7
        %v565 = vsub.s32 0, %v564
        %v566 = vsel %vm560, %v565, %v564
        %vm567 = vcmp.lt.s32.totalorder %v523, 0
        %v568 = vsub.s32 0, %v523
        %v569 = vsel %vm567, %v568, %v523
        %v570 = vshrl.u32 %v569, 3
        %v571 = vand.u32 %v569, 7
        %v572 = vsub.s32 0, %v571
        %v573 = vsel %vm567, %v572, %v571
        %vm574 = vcmp.lt.s32.totalorder %v524, 0
        %v575 = vsub.s32 0, %v524
        %v576 = vsel %vm574, %v575, %v524
        %v577 = vshrl.u32 %v576, 3
        %v578 = vand.u32 %v576, 7
        %v579 = vsub.s32 0, %v578
        %v580 = vsel %vm574, %v579, %v578
        %vm581 = vcmp.ne.s32.totalorder %v531, 0
        %vm582 = vcmp.ne.s32.totalorder %v538, 0
        %vm583 = vcmp.ne.s32.totalorder %v545, 0
        %vm584 = vcmp.ne.s32.totalorder %v552, 0
        %vm585 = vcmp.ne.s32.totalorder %v559, 0
        %vm586 = vcmp.ne.s32.totalorder %v566, 0
        %vm587 = vcmp.ne.s32.totalorder %v573, 0
        %vm588 = vcmp.ne.s32.totalorder %v580, 0
        %vm589 = vcmp.lt.s32.totalorder %v531, 0
        %vm590 = vcmp.lt.s32.totalorder %v538, 0
        %vm591 = vcmp.lt.s32.totalorder %v545, 0
        %vm592 = vcmp.lt.s32.totalorder %v552, 0
        %vm593 = vcmp.lt.s32.totalorder %v559, 0
        %vm594 = vcmp.lt.s32.totalorder %v566, 0
        %vm595 = vcmp.lt.s32.totalorder %v573, 0
        %vm596 = vcmp.lt.s32.totalorder %v580, 0
        %vm597 = vmand %vm589, %vm581
        %vm598 = vmand %vm590, %vm582
        %vm599 = vmand %vm591, %vm583
        %vm600 = vmand %vm592, %vm584
        %vm601 = vmand %vm593, %vm585
        %vm602 = vmand %vm594, %vm586
        %vm603 = vmand %vm595, %vm587
        %vm604 = vmand %vm596, %vm588
        %v605 = vadd.s32 %v531, 8
        %v606 = vadd.s32 %v538, 8
        %v607 = vadd.s32 %v545, 8
        %v608 = vadd.s32 %v552, 8
        %v609 = vadd.s32 %v559, 8
        %v610 = vadd.s32 %v566, 8
        %v611 = vadd.s32 %v573, 8
        %v612 = vadd.s32 %v580, 8
        %v613 = vsel %vm597, %v605, %v531
        %v614 = vsel %vm598, %v606, %v538
        %v615 = vsel %vm599, %v607, %v545
        %v616 = vsel %vm600, %v608, %v552
        %v617 = vsel %vm601, %v609, %v559
        %v618 = vsel %vm602, %v610, %v566
        %v619 = vsel %vm603, %v611, %v573
        %v620 = vsel %vm604, %v612, %v580
        %vm621 = vcmp.ne.s32.totalorder %v613, 0
        %vm622 = vcmp.ne.s32.totalorder %v614, 0
        %vm623 = vcmp.ne.s32.totalorder %v615, 0
        %vm624 = vcmp.ne.s32.totalorder %v616, 0
        %vm625 = vcmp.ne.s32.totalorder %v617, 0
        %vm626 = vcmp.ne.s32.totalorder %v618, 0
        %vm627 = vcmp.ne.s32.totalorder %v619, 0
        %vm628 = vcmp.ne.s32.totalorder %v620, 0
        %vm629 = vcmp.ne.s32.totalorder %v613, 7
        %vm630 = vcmp.ne.s32.totalorder %v614, 7
        %vm631 = vcmp.ne.s32.totalorder %v615, 7
        %vm632 = vcmp.ne.s32.totalorder %v616, 7
        %vm633 = vcmp.ne.s32.totalorder %v617, 7
        %vm634 = vcmp.ne.s32.totalorder %v618, 7
        %vm635 = vcmp.ne.s32.totalorder %v619, 7
        %vm636 = vcmp.ne.s32.totalorder %v620, 7
        %v637 = vld [vmem:[#allocation2 + $0x7] sm:$0xff]
        %v638 = vld [vmem:[#allocation2 + $0xf] sm:$0xff]
        %v639 = vld [vmem:[#allocation2 + $0x17] sm:$0xff]
        %v640 = vld [vmem:[#allocation2 + $0x1f] sm:$0xff]
        %v641 = vld [vmem:[#allocation2 + $0x27] sm:$0xff]
        %v642 = vld [vmem:[#allocation2 + $0x2f] sm:$0xff]
        %v643 = vld [vmem:[#allocation2 + $0x37] sm:$0xff]
        %v644 = vld [vmem:[#allocation2 + $0x3f] sm:$0xff]
        %v645 = vsel %vm621, 1, 0
        %v646 = vsel %vm622, 1, 0
        %v647 = vsel %vm623, 1, 0
        %v648 = vsel %vm624, 1, 0
        %v649 = vsel %vm625, 1, 0
        %v650 = vsel %vm626, 1, 0
        %v651 = vsel %vm627, 1, 0
        %v652 = vsel %vm628, 1, 0
        %vm653 = vcmp.eq.s32.totalorder %v645, 1
        %vm654 = vcmp.eq.s32.totalorder %v646, 1
        %vm655 = vcmp.eq.s32.totalorder %v647, 1
        %vm656 = vcmp.eq.s32.totalorder %v648, 1
        %vm657 = vcmp.eq.s32.totalorder %v649, 1
        %vm658 = vcmp.eq.s32.totalorder %v650, 1
        %vm659 = vcmp.eq.s32.totalorder %v651, 1
        %vm660 = vcmp.eq.s32.totalorder %v652, 1
        %v661 = vsel %vm653, %v637, 0.0
        %v662 = vsel %vm654, %v638, 0.0
        %v663 = vsel %vm655, %v639, 0.0
        %v664 = vsel %vm656, %v640, 0.0
        %v665 = vsel %vm657, %v641, 0.0
        %v666 = vsel %vm658, %v642, 0.0
        %v667 = vsel %vm659, %v643, 0.0
        %v668 = vsel %vm660, %v644, 0.0
        %v669 = vld [vmem:[#allocation2 + $0x8] sm:$0xff]
        %v670 = vld [vmem:[#allocation2 + $0x10] sm:$0xff]
        %v671 = vld [vmem:[#allocation2 + $0x18] sm:$0xff]
        %v672 = vld [vmem:[#allocation2 + $0x20] sm:$0xff]
        %v673 = vld [vmem:[#allocation2 + $0x28] sm:$0xff]
        %v674 = vld [vmem:[#allocation2 + $0x30] sm:$0xff]
        %v675 = vld [vmem:[#allocation2 + $0x38] sm:$0xff]
        %v676 = vld [vmem:[#allocation2 + $0x40] sm:$0xff]
        %v677 = vld [vmem:[#allocation2 + $0x9] sm:$0xff]
        %v678 = vld [vmem:[#allocation2 + $0x11] sm:$0xff]
        %v679 = vld [vmem:[#allocation2 + $0x19] sm:$0xff]
        %v680 = vld [vmem:[#allocation2 + $0x21] sm:$0xff]
        %v681 = vld [vmem:[#allocation2 + $0x29] sm:$0xff]
        %v682 = vld [vmem:[#allocation2 + $0x31] sm:$0xff]
        %v683 = vld [vmem:[#allocation2 + $0x39] sm:$0xff]
        %v684 = vld [vmem:[#allocation2 + $0x41] sm:$0xff]
        %v685 = vsel %vm629, 1, 0
        %v686 = vsel %vm630, 1, 0
        %v687 = vsel %vm631, 1, 0
        %v688 = vsel %vm632, 1, 0
        %v689 = vsel %vm633, 1, 0
        %v690 = vsel %vm634, 1, 0
        %v691 = vsel %vm635, 1, 0
        %v692 = vsel %vm636, 1, 0
        %vm693 = vcmp.eq.s32.totalorder %v685, 1
        %vm694 = vcmp.eq.s32.totalorder %v686, 1
        %vm695 = vcmp.eq.s32.totalorder %v687, 1
        %vm696 = vcmp.eq.s32.totalorder %v688, 1
        %vm697 = vcmp.eq.s32.totalorder %v689, 1
        %vm698 = vcmp.eq.s32.totalorder %v690, 1
        %vm699 = vcmp.eq.s32.totalorder %v691, 1
        %vm700 = vcmp.eq.s32.totalorder %v692, 1
        %v701 = vsel %vm693, %v677, 0.0
        %v702 = vsel %vm694, %v678, 0.0
        %v703 = vsel %vm695, %v679, 0.0
        %v704 = vsel %vm696, %v680, 0.0
        %v705 = vsel %vm697, %v681, 0.0
        %v706 = vsel %vm698, %v682, 0.0
        %v707 = vsel %vm699, %v683, 0.0
        %v708 = vsel %vm700, %v684, 0.0
        %v709 = vld [vmem:[#allocation2 + $0x47] sm:$0xff]
        %v710 = vsel %vm653, %v638, 0.0
        %v711 = vsel %vm654, %v639, 0.0
        %v712 = vsel %vm655, %v640, 0.0
        %v713 = vsel %vm656, %v641, 0.0
        %v714 = vsel %vm657, %v642, 0.0
        %v715 = vsel %vm658, %v643, 0.0
        %v716 = vsel %vm659, %v644, 0.0
        %v717 = vsel %vm660, %v709, 0.0
        %v718 = vld [vmem:[#allocation2 + $0x48] sm:$0xff]
        %v719 = vld [vmem:[#allocation2 + $0x49] sm:$0xff]
        %v720 = vsel %vm693, %v678, 0.0
        %v721 = vsel %vm694, %v679, 0.0
        %v722 = vsel %vm695, %v680, 0.0
        %v723 = vsel %vm696, %v681, 0.0
        %v724 = vsel %vm697, %v682, 0.0
        %v725 = vsel %vm698, %v683, 0.0
        %v726 = vsel %vm699, %v684, 0.0
        %v727 = vsel %vm700, %v719, 0.0
        %v728 = vld [vmem:[#allocation2 + $0x4f] sm:$0xff]
        %v729 = vsel %vm653, %v639, 0.0
        %v730 = vsel %vm654, %v640, 0.0
        %v731 = vsel %vm655, %v641, 0.0
        %v732 = vsel %vm656, %v642, 0.0
        %v733 = vsel %vm657, %v643, 0.0
        %v734 = vsel %vm658, %v644, 0.0
        %v735 = vsel %vm659, %v709, 0.0
        %v736 = vsel %vm660, %v728, 0.0
        %v737 = vld [vmem:[#allocation2 + $0x50] sm:$0xff]
        %v738 = vld [vmem:[#allocation2 + $0x51] sm:$0xff]
        %v739 = vsel %vm693, %v679, 0.0
        %v740 = vsel %vm694, %v680, 0.0
        %v741 = vsel %vm695, %v681, 0.0
        %v742 = vsel %vm696, %v682, 0.0
        %v743 = vsel %vm697, %v683, 0.0
        %v744 = vsel %vm698, %v684, 0.0
        %v745 = vsel %vm699, %v719, 0.0
        %v746 = vsel %vm700, %v738, 0.0
        %755 = vrot.lane.b32.xlu0 %v669, 8
        %v756 = vpop.permute.xlu0 %755
        %757 = vrot.lane.b32.xlu0 %v670, 8
        %v758 = vpop.permute.xlu0 %757
        %759 = vrot.lane.b32.xlu0 %v671, 8
        %v760 = vpop.permute.xlu0 %759
        %761 = vrot.lane.b32.xlu0 %v672, 8
        %v762 = vpop.permute.xlu0 %761
        %763 = vrot.lane.b32.xlu0 %v673, 8
        %v764 = vpop.permute.xlu0 %763
        %765 = vrot.lane.b32.xlu0 %v674, 8
        %v766 = vpop.permute.xlu0 %765
        %767 = vrot.lane.b32.xlu0 %v675, 8
        %v768 = vpop.permute.xlu0 %767
        %769 = vrot.lane.b32.xlu0 %v676, 8
        %v770 = vpop.permute.xlu0 %769
        %787 = vrot.lane.b32.xlu0 %v701, 16
        %v788 = vpop.permute.xlu0 %787
        %789 = vrot.lane.b32.xlu0 %v702, 16
        %v790 = vpop.permute.xlu0 %789
        %791 = vrot.lane.b32.xlu0 %v703, 16
        %v792 = vpop.permute.xlu0 %791
        %793 = vrot.lane.b32.xlu0 %v704, 16
        %v794 = vpop.permute.xlu0 %793
        %795 = vrot.lane.b32.xlu0 %v705, 16
        %v796 = vpop.permute.xlu0 %795
        %797 = vrot.lane.b32.xlu0 %v706, 16
        %v798 = vpop.permute.xlu0 %797
        %799 = vrot.lane.b32.xlu0 %v707, 16
        %v800 = vpop.permute.xlu0 %799
        %801 = vrot.lane.b32.xlu0 %v708, 16
        %v802 = vpop.permute.xlu0 %801
        %819 = vrot.lane.b32.xlu0 %v710, 24
        %v820 = vpop.permute.xlu0 %819
        %821 = vrot.lane.b32.xlu0 %v711, 24
        %v822 = vpop.permute.xlu0 %821
        %823 = vrot.lane.b32.xlu0 %v712, 24
        %v824 = vpop.permute.xlu0 %823
        %825 = vrot.lane.b32.xlu0 %v713, 24
        %v826 = vpop.permute.xlu0 %825
        %827 = vrot.lane.b32.xlu0 %v714, 24
        %v828 = vpop.permute.xlu0 %827
        %829 = vrot.lane.b32.xlu0 %v715, 24
        %v830 = vpop.permute.xlu0 %829
        %831 = vrot.lane.b32.xlu0 %v716, 24
        %v832 = vpop.permute.xlu0 %831
        %833 = vrot.lane.b32.xlu0 %v717, 24
        %v834 = vpop.permute.xlu0 %833
        %844 = vrot.lane.b32.xlu0 %v670, 32
        %v845 = vpop.permute.xlu0 %844
        %846 = vrot.lane.b32.xlu0 %v671, 32
        %v847 = vpop.permute.xlu0 %846
        %848 = vrot.lane.b32.xlu0 %v672, 32
        %v849 = vpop.permute.xlu0 %848
        %850 = vrot.lane.b32.xlu0 %v673, 32
        %v851 = vpop.permute.xlu0 %850
        %852 = vrot.lane.b32.xlu0 %v674, 32
        %v853 = vpop.permute.xlu0 %852
        %854 = vrot.lane.b32.xlu0 %v675, 32
        %v855 = vpop.permute.xlu0 %854
        %856 = vrot.lane.b32.xlu0 %v676, 32
        %v857 = vpop.permute.xlu0 %856
        %858 = vrot.lane.b32.xlu0 %v718, 32
        %v859 = vpop.permute.xlu0 %858
        %876 = vrot.lane.b32.xlu0 %v720, 40
        %v877 = vpop.permute.xlu0 %876
        %878 = vrot.lane.b32.xlu0 %v721, 40
        %v879 = vpop.permute.xlu0 %878
        %880 = vrot.lane.b32.xlu0 %v722, 40
        %v881 = vpop.permute.xlu0 %880
        %882 = vrot.lane.b32.xlu0 %v723, 40
        %v883 = vpop.permute.xlu0 %882
        %884 = vrot.lane.b32.xlu0 %v724, 40
        %v885 = vpop.permute.xlu0 %884
        %886 = vrot.lane.b32.xlu0 %v725, 40
        %v887 = vpop.permute.xlu0 %886
        %888 = vrot.lane.b32.xlu0 %v726, 40
        %v889 = vpop.permute.xlu0 %888
        %890 = vrot.lane.b32.xlu0 %v727, 40
        %v891 = vpop.permute.xlu0 %890
        %908 = vrot.lane.b32.xlu0 %v729, 48
        %v909 = vpop.permute.xlu0 %908
        %910 = vrot.lane.b32.xlu0 %v730, 48
        %v911 = vpop.permute.xlu0 %910
        %912 = vrot.lane.b32.xlu0 %v731, 48
        %v913 = vpop.permute.xlu0 %912
        %914 = vrot.lane.b32.xlu0 %v732, 48
        %v915 = vpop.permute.xlu0 %914
        %916 = vrot.lane.b32.xlu0 %v733, 48
        %v917 = vpop.permute.xlu0 %916
        %918 = vrot.lane.b32.xlu0 %v734, 48
        %v919 = vpop.permute.xlu0 %918
        %920 = vrot.lane.b32.xlu0 %v735, 48
        %v921 = vpop.permute.xlu0 %920
        %922 = vrot.lane.b32.xlu0 %v736, 48
        %v923 = vpop.permute.xlu0 %922
        %933 = vrot.lane.b32.xlu0 %v671, 56
        %v934 = vpop.permute.xlu0 %933
        %935 = vrot.lane.b32.xlu0 %v672, 56
        %v936 = vpop.permute.xlu0 %935
        %937 = vrot.lane.b32.xlu0 %v673, 56
        %v938 = vpop.permute.xlu0 %937
        %939 = vrot.lane.b32.xlu0 %v674, 56
        %v940 = vpop.permute.xlu0 %939
        %941 = vrot.lane.b32.xlu0 %v675, 56
        %v942 = vpop.permute.xlu0 %941
        %943 = vrot.lane.b32.xlu0 %v676, 56
        %v944 = vpop.permute.xlu0 %943
        %945 = vrot.lane.b32.xlu0 %v718, 56
        %v946 = vpop.permute.xlu0 %945
        %947 = vrot.lane.b32.xlu0 %v737, 56
        %v948 = vpop.permute.xlu0 %947
        %965 = vrot.lane.b32.xlu0 %v739, 64
        %v966 = vpop.permute.xlu0 %965
        %967 = vrot.lane.b32.xlu0 %v740, 64
        %v968 = vpop.permute.xlu0 %967
        %969 = vrot.lane.b32.xlu0 %v741, 64
        %v970 = vpop.permute.xlu0 %969
        %971 = vrot.lane.b32.xlu0 %v742, 64
        %v972 = vpop.permute.xlu0 %971
        %973 = vrot.lane.b32.xlu0 %v743, 64
        %v974 = vpop.permute.xlu0 %973
        %975 = vrot.lane.b32.xlu0 %v744, 64
        %v976 = vpop.permute.xlu0 %975
        %977 = vrot.lane.b32.xlu0 %v745, 64
        %v978 = vpop.permute.xlu0 %977
        %979 = vrot.lane.b32.xlu0 %v746, 64
        %v980 = vpop.permute.xlu0 %979
        %v989 = vsel %vm359, %v661, %v756
        %v990 = vsel %vm359, %v662, %v758
        %v991 = vsel %vm359, %v663, %v760
        %v992 = vsel %vm359, %v664, %v762
        %v993 = vsel %vm359, %v665, %v764
        %v994 = vsel %vm359, %v666, %v766
        %v995 = vsel %vm359, %v667, %v768
        %v996 = vsel %vm359, %v668, %v770
        %vm997 = vcmask 130048
        %v998 = vsel %vm997, %v989, %v788
        %v999 = vsel %vm997, %v990, %v790
        %v1000 = vsel %vm997, %v991, %v792
        %v1001 = vsel %vm997, %v992, %v794
        %v1002 = vsel %vm997, %v993, %v796
        %v1003 = vsel %vm997, %v994, %v798
        %v1004 = vsel %vm997, %v995, %v800
        %v1005 = vsel %vm997, %v996, %v802
        %vm1006 = vcmask 195584
        %v1007 = vsel %vm1006, %v998, %v820
        %v1008 = vsel %vm1006, %v999, %v822
        %v1009 = vsel %vm1006, %v1000, %v824
        %v1010 = vsel %vm1006, %v1001, %v826
        %v1011 = vsel %vm1006, %v1002, %v828
        %v1012 = vsel %vm1006, %v1003, %v830
        %v1013 = vsel %vm1006, %v1004, %v832
        %v1014 = vsel %vm1006, %v1005, %v834
        %v1015 = vsel %vm392, %v1007, %v845
        %v1016 = vsel %vm392, %v1008, %v847
        %v1017 = vsel %vm392, %v1009, %v849
        %v1018 = vsel %vm392, %v1010, %v851
        %v1019 = vsel %vm392, %v1011, %v853
        %v1020 = vsel %vm392, %v1012, %v855
        %v1021 = vsel %vm392, %v1013, %v857
        %v1022 = vsel %vm392, %v1014, %v859
        %vm1023 = vcmask 326656
        %v1024 = vsel %vm1023, %v1015, %v877
        %v1025 = vsel %vm1023, %v1016, %v879
        %v1026 = vsel %vm1023, %v1017, %v881
        %v1027 = vsel %vm1023, %v1018, %v883
        %v1028 = vsel %vm1023, %v1019, %v885
        %v1029 = vsel %vm1023, %v1020, %v887
        %v1030 = vsel %vm1023, %v1021, %v889
        %v1031 = vsel %vm1023, %v1022, %v891
        %vm1032 = vcmask 392192
        %v1033 = vsel %vm1032, %v1024, %v909
        %v1034 = vsel %vm1032, %v1025, %v911
        %v1035 = vsel %vm1032, %v1026, %v913
        %v1036 = vsel %vm1032, %v1027, %v915
        %v1037 = vsel %vm1032, %v1028, %v917
        %v1038 = vsel %vm1032, %v1029, %v919
        %v1039 = vsel %vm1032, %v1030, %v921
        %v1040 = vsel %vm1032, %v1031, %v923
        %vm1041 = vcmask 457728
        %v1042 = vsel %vm1041, %v1033, %v934
        %v1043 = vsel %vm1041, %v1034, %v936
        %v1044 = vsel %vm1041, %v1035, %v938
        %v1045 = vsel %vm1041, %v1036, %v940
        %v1046 = vsel %vm1041, %v1037, %v942
        %v1047 = vsel %vm1041, %v1038, %v944
        %v1048 = vsel %vm1041, %v1039, %v946
        %v1049 = vsel %vm1041, %v1040, %v948
        %vm1050 = vcmask 523264
        %v1051 = vsel %vm1050, %v1042, %v966
        %v1052 = vsel %vm1050, %v1043, %v968
        %v1053 = vsel %vm1050, %v1044, %v970
        %v1054 = vsel %vm1050, %v1045, %v972
        %v1055 = vsel %vm1050, %v1046, %v974
        %v1056 = vsel %vm1050, %v1047, %v976
        %v1057 = vsel %vm1050, %v1048, %v978
        %v1058 = vsel %vm1050, %v1049, %v980
        %v1059 = vpack.c.bf16 %v1052, %v1051
        %v1060 = vpack.c.bf16 %v1054, %v1053
        %v1061 = vpack.c.bf16 %v1056, %v1055
        %v1062 = vpack.c.bf16 %v1058, %v1057
        %v1063 = vld [vmem:[%s4] sm:$0xf]
        %v1064 = vld [vmem:[%s4 + $0x4] sm:$0xf]
        %v1065 = vld [vmem:[%s4 + $0x8] sm:$0xf]
        %v1066 = vld [vmem:[%s4 + $0xc] sm:$0xf]
        %v1067 = vld [vmem:[%s4 + $0x10] sm:$0xf]
        %v1068 = vld [vmem:[%s4 + $0x14] sm:$0xf]
        %v1069 = vld [vmem:[%s4 + $0x18] sm:$0xf]
        %v1070 = vld [vmem:[%s4 + $0x1c] sm:$0xf]
        %v1071 = vld [vmem:[%s4 + $0x20] sm:$0xf]
        %v1081 = vunpack.c.l.b16 %v1063
        %v1082 = vunpack.c.l.b16 %v1064
        %v1083 = vunpack.c.l.b16 %v1065
        %v1084 = vunpack.c.l.b16 %v1066
        %v1085 = vunpack.c.l.b16 %v1067
        %v1086 = vunpack.c.l.b16 %v1068
        %v1087 = vunpack.c.l.b16 %v1069
        %v1088 = vunpack.c.l.b16 %v1070
        %v1089 = vunpack.c.l.b16 %v1071
        %v1090 = vpack.c.b16 %v1082, %v1081
        %v1091 = vpack.c.b16 %v1084, %v1083
        %v1092 = vpack.c.b16 %v1086, %v1085
        %v1093 = vpack.c.b16 %v1088, %v1087
        %v1094 = vpack.c.b16 %v1089, %v1089
        %vm1099 = vcmask 588800
        %v1101 = vsel %vm1099, %v1059, 0
        %v1104 = vsel %vm1099, %v1060, 0
        %v1107 = vsel %vm1099, %v1061, 0
        %v1110 = vsel %vm1099, %v1062, 0
        %vm1112 = vcmask 1043456
        %v1114 = vsel %vm1112, %v1094, 0
        %1116 = vmatprep.subr.bf16.mxu0 0
        %1117 = vmatpush1.bf16.msra.mxu0 %v1090
        %1118 = vmatprep.subr.bf16.mxu0 0
        %1119 = vmatpush1.bf16.msra.mxu0 %v1091
        %1120 = vmatprep.subr.bf16.mxu0 0
        %1121 = vmatpush1.bf16.msra.mxu0 %v1092
        %1122 = vmatprep.subr.bf16.mxu0 0
        %1123 = vmatpush1.bf16.msra.mxu0 %v1093
        %1124 = vmatprep.subr.bf16.mxu0 0
        %1125 = vmatpush1.bf16.msra.mxu0 %v1114
        %1126 = vmatprep.subr.bf16.mxu0 0
        %1127 = vmatpush1.bf16.msra.mxu0 0
        %1128 = vmatprep.subr.bf16.mxu0 0
        %1129 = vmatpush1.bf16.msra.mxu0 0
        %1130 = vmatprep.subr.bf16.mxu0 0
        %1131 = vmatpush1.bf16.msra.mxu0 0
        %1132 = vmatprep.subr.bf16.mxu0 0
        %1133 = vmatpush1.bf16.msra.mxu0 0
        %1134 = vmatprep.subr.bf16.mxu0 0
        %1135 = vmatpush1.bf16.msra.mxu0 0
        %1136 = vmatprep.subr.bf16.mxu0 0
        %1137 = vmatpush1.bf16.msra.mxu0 0
        %1138 = vmatprep.subr.bf16.mxu0 0
        %1139 = vmatpush1.bf16.msra.mxu0 0
        %1140 = vmatprep.subr.bf16.mxu0 0
        %1141 = vmatpush1.bf16.msra.mxu0 0
        %1142 = vmatprep.subr.bf16.mxu0 0
        %1143 = vmatpush1.bf16.msra.mxu0 0
        %1144 = vmatprep.subr.bf16.mxu0 0
        %1145 = vmatpush1.bf16.msra.mxu0 0
        %1146 = vmatprep.subr.bf16.mxu0 0
        %1147 = vmatpush1.bf16.msra.mxu0 0
        %1148 = vmatprep.mubr.bf16.mxu0 0
        %1149 = vmatmul.mubr.bf16.gmra.mrb[0].mxu0 %v1101
        %v1150 = vpop.f32.mrb[0].mxu0
        %v1151 = vadd.f32 0.0, %v1150
        %v1152 = vpop.f32.mrb[0].mxu0
        %v1153 = vpop.f32.mrb[0].mxu0
        %v1154 = vadd.f32 0.0, %v1153
        %v1155 = vpop.f32.mrb[0].mxu0
        %1156 = vmatprep.mubr.bf16.mxu0 0
        %1157 = vmatmul.mubr.bf16.gmra.mrb[0].mxu0 %v1104
        %v1158 = vpop.f32.mrb[0].mxu0
        %v1159 = vadd.f32 0.0, %v1158
        %v1160 = vpop.f32.mrb[0].mxu0
        %v1161 = vpop.f32.mrb[0].mxu0
        %v1162 = vadd.f32 0.0, %v1161
        %v1163 = vpop.f32.mrb[0].mxu0
        %1164 = vmatprep.mubr.bf16.mxu0 0
        %1165 = vmatmul.mubr.bf16.gmra.mrb[0].mxu0 %v1107
        %v1166 = vpop.f32.mrb[0].mxu0
        %v1167 = vadd.f32 0.0, %v1166
        %v1168 = vpop.f32.mrb[0].mxu0
        %v1169 = vpop.f32.mrb[0].mxu0
        %v1170 = vadd.f32 0.0, %v1169
        %v1171 = vpop.f32.mrb[0].mxu0
        %1172 = vmatprep.mubr.bf16.mxu0 0
        %1173 = vmatmul.mubr.bf16.gmra.mrb[0].mxu0 %v1110
        %v1174 = vpop.f32.mrb[0].mxu0
        %v1175 = vadd.f32 0.0, %v1174
        %v1176 = vpop.f32.mrb[0].mxu0
        %v1177 = vpop.f32.mrb[0].mxu0
        %v1178 = vadd.f32 0.0, %v1177
        %v1179 = vpop.f32.mrb[0].mxu0
        %1180 = vdwg.mxu0
        %v1181 = vld [vmem:[%s5] sm:$0x1]
        %v1183 = vlaneseq
        %v1184 = vshrl.u32 %v1183, 7
        %v1185 = vsub.s32 0, %v1184
        %v1186 = vrot.slane %v1181, %v1185
        %v1188 = vmul.f32 %v1151, %v1186
        %v1189 = vmul.f32 %v1154, %v1186
        %v1190 = vmul.f32 %v1159, %v1186
        %v1191 = vmul.f32 %v1162, %v1186
        %v1192 = vmul.f32 %v1167, %v1186
        %v1193 = vmul.f32 %v1170, %v1186
        %v1194 = vmul.f32 %v1175, %v1186
        %v1195 = vmul.f32 %v1178, %v1186
        %v1196 = vld [vmem:[%s6] sm:$0x1]
        %v1198 = vlaneseq
        %v1199 = vshrl.u32 %v1198, 7
        %v1200 = vsub.s32 0, %v1199
        %v1201 = vrot.slane %v1196, %v1200
        %v1203 = vadd.f32 %v1188, %v1201
        %v1204 = vadd.f32 %v1189, %v1201
        %v1205 = vadd.f32 %v1190, %v1201
        %v1206 = vadd.f32 %v1191, %v1201
        %v1207 = vadd.f32 %v1192, %v1201
        %v1208 = vadd.f32 %v1193, %v1201
        %v1209 = vadd.f32 %v1194, %v1201
        %v1210 = vadd.f32 %v1195, %v1201
        %v1211 = vmax.f32 %v1203, 0.0
        %v1212 = vmax.f32 %v1204, 0.0
        %v1213 = vmax.f32 %v1205, 0.0
        %v1214 = vmax.f32 %v1206, 0.0
        %v1215 = vmax.f32 %v1207, 0.0
        %v1216 = vmax.f32 %v1208, 0.0
        %v1217 = vmax.f32 %v1209, 0.0
        %v1218 = vmax.f32 %v1210, 0.0
        %v1219 = vpack.c.bf16 %v1212, %v1211
        %v1220 = vpack.c.bf16 %v1214, %v1213
        %v1221 = vpack.c.bf16 %v1216, %v1215
        %v1222 = vpack.c.bf16 %v1218, %v1217
        %v1223 = vld [vmem:[%s7] sm:$0xf]
        %v1225 = vsel %vm359, %v1219, 0
        %v1228 = vsel %vm359, %v1220, 0
        %v1231 = vsel %vm359, %v1221, 0
        %v1234 = vsel %vm359, %v1222, 0
        %v1237 = vsel %vm1112, %v1223, 0
        %1239 = vmatprep.subr.bf16.mxu0 0
        %1240 = vmatpush1.bf16.msra.mxu0 %v1237
        %1241 = vmatprep.subr.bf16.mxu0 0
        %1242 = vmatpush1.bf16.msra.mxu0 0
        %1243 = vmatprep.subr.bf16.mxu0 0
        %1244 = vmatpush1.bf16.msra.mxu0 0
        %1245 = vmatprep.subr.bf16.mxu0 0
        %1246 = vmatpush1.bf16.msra.mxu0 0
        %1247 = vmatprep.subr.bf16.mxu0 0
        %1248 = vmatpush1.bf16.msra.mxu0 0
        %1249 = vmatprep.subr.bf16.mxu0 0
        %1250 = vmatpush1.bf16.msra.mxu0 0
        %1251 = vmatprep.subr.bf16.mxu0 0
        %1252 = vmatpush1.bf16.msra.mxu0 0
        %1253 = vmatprep.subr.bf16.mxu0 0
        %1254 = vmatpush1.bf16.msra.mxu0 0
        %1255 = vmatprep.subr.bf16.mxu0 0
        %1256 = vmatpush1.bf16.msra.mxu0 0
        %1257 = vmatprep.subr.bf16.mxu0 0
        %1258 = vmatpush1.bf16.msra.mxu0 0
        %1259 = vmatprep.subr.bf16.mxu0 0
        %1260 = vmatpush1.bf16.msra.mxu0 0
        %1261 = vmatprep.subr.bf16.mxu0 0
        %1262 = vmatpush1.bf16.msra.mxu0 0
        %1263 = vmatprep.subr.bf16.mxu0 0
        %1264 = vmatpush1.bf16.msra.mxu0 0
        %1265 = vmatprep.subr.bf16.mxu0 0
        %1266 = vmatpush1.bf16.msra.mxu0 0
        %1267 = vmatprep.subr.bf16.mxu0 0
        %1268 = vmatpush1.bf16.msra.mxu0 0
        %1269 = vmatprep.subr.bf16.mxu0 0
        %1270 = vmatpush1.bf16.msra.mxu0 0
        %1271 = vmatprep.mubr.bf16.mxu0 0
        %1272 = vmatmul.mubr.bf16.gmra.mrb[0].mxu0 %v1225
        %v1273 = vpop.f32.mrb[0].mxu0
        %v1274 = vadd.f32 0.0, %v1273
        %v1275 = vpop.f32.mrb[0].mxu0
        %v1276 = vpop.f32.mrb[0].mxu0
        %v1277 = vadd.f32 0.0, %v1276
        %v1278 = vpop.f32.mrb[0].mxu0
        %1279 = vmatprep.mubr.bf16.mxu0 0
        %1280 = vmatmul.mubr.bf16.gmra.mrb[0].mxu0 %v1228
        %v1281 = vpop.f32.mrb[0].mxu0
        %v1282 = vadd.f32 0.0, %v1281
        %v1283 = vpop.f32.mrb[0].mxu0
        %v1284 = vpop.f32.mrb[0].mxu0
        %v1285 = vadd.f32 0.0, %v1284
        %v1286 = vpop.f32.mrb[0].mxu0
        %1287 = vmatprep.mubr.bf16.mxu0 0
        %1288 = vmatmul.mubr.bf16.gmra.mrb[0].mxu0 %v1231
        %v1289 = vpop.f32.mrb[0].mxu0
        %v1290 = vadd.f32 0.0, %v1289
        %v1291 = vpop.f32.mrb[0].mxu0
        %v1292 = vpop.f32.mrb[0].mxu0
        %v1293 = vadd.f32 0.0, %v1292
        %v1294 = vpop.f32.mrb[0].mxu0
        %1295 = vmatprep.mubr.bf16.mxu0 0
        %1296 = vmatmul.mubr.bf16.gmra.mrb[0].mxu0 %v1234
        %v1297 = vpop.f32.mrb[0].mxu0
        %v1298 = vadd.f32 0.0, %v1297
        %v1299 = vpop.f32.mrb[0].mxu0
        %v1300 = vpop.f32.mrb[0].mxu0
        %v1301 = vadd.f32 0.0, %v1300
        %v1302 = vpop.f32.mrb[0].mxu0
        %1303 = vdwg.mxu0
        %v1304 = vld [vmem:[%s8] sm:$0x1]
        %v1306 = vlaneseq
        %v1307 = vshrl.u32 %v1306, 7
        %v1308 = vsub.s32 0, %v1307
        %v1309 = vrot.slane %v1304, %v1308
        %v1311 = vmul.f32 %v1274, %v1309
        %v1312 = vmul.f32 %v1277, %v1309
        %v1313 = vmul.f32 %v1282, %v1309
        %v1314 = vmul.f32 %v1285, %v1309
        %v1315 = vmul.f32 %v1290, %v1309
        %v1316 = vmul.f32 %v1293, %v1309
        %v1317 = vmul.f32 %v1298, %v1309
        %v1318 = vmul.f32 %v1301, %v1309
        %v1319 = vld [vmem:[%s9] sm:$0x1]
        %v1321 = vlaneseq
        %v1322 = vshrl.u32 %v1321, 7
        %v1323 = vsub.s32 0, %v1322
        %v1324 = vrot.slane %v1319, %v1323
        %v1326 = vadd.f32 %v1311, %v1324
        %v1327 = vadd.f32 %v1312, %v1324
        %v1328 = vadd.f32 %v1313, %v1324
        %v1329 = vadd.f32 %v1314, %v1324
        %v1330 = vadd.f32 %v1315, %v1324
        %v1331 = vadd.f32 %v1316, %v1324
        %v1332 = vadd.f32 %v1317, %v1324
        %v1333 = vadd.f32 %v1318, %v1324
        %v1334 = vadd.f32 %v1326, %v364
        %v1335 = vadd.f32 %v1327, %v365
        %v1336 = vadd.f32 %v1328, %v366
        %v1337 = vadd.f32 %v1329, %v367
        %v1338 = vadd.f32 %v1330, %v368
        %v1339 = vadd.f32 %v1331, %v369
        %v1340 = vadd.f32 %v1332, %v370
        %v1341 = vadd.f32 %v1333, %v371
        %v1342 = vmax.f32 %v1334, 0.0
        %v1343 = vmax.f32 %v1335, 0.0
        %v1344 = vmax.f32 %v1336, 0.0
        %v1345 = vmax.f32 %v1337, 0.0
        %v1346 = vmax.f32 %v1338, 0.0
        %v1347 = vmax.f32 %v1339, 0.0
        %v1348 = vmax.f32 %v1340, 0.0
        %v1349 = vmax.f32 %v1341, 0.0
        %1350 = vst.msk [vmem:[%s352] sm:$0xff] %vm392, %v1342
        %1351 = vst.msk [vmem:[%s352 + $0x8] sm:$0xff] %vm392, %v1343
        %1352 = vst.msk [vmem:[%s352 + $0x10] sm:$0xff] %vm392, %v1344
        %1353 = vst.msk [vmem:[%s352 + $0x18] sm:$0xff] %vm392, %v1345
        %1354 = vst.msk [vmem:[%s352 + $0x20] sm:$0xff] %vm392, %v1346
        %1355 = vst.msk [vmem:[%s352 + $0x28] sm:$0xff] %vm392, %v1347
        %1356 = vst.msk [vmem:[%s352 + $0x30] sm:$0xff] %vm392, %v1348
        %1357 = vst.msk [vmem:[%s352 + $0x38] sm:$0xff] %vm392, %v1349
        %s1358 = sand.u32 %s247, 1
        %s1359 = scalar_lea.sflag [#allocation4], %s1358
        %s1360 = sand.u32 %s247, 1
        %s1361 = smul.addr %s1360, 64
        %s1362 = scalar_lea.vmem [#allocation3], %s1361
        // Predicated region
        $region61: #{bottleneck_pallas.1} parent=59 // pred_check
          %p1363 = pneg %p257
        $region62: #{bottleneck_pallas.1} parent=59 // pred_check_branch
          %1365 = sbr.rel (%p1363) target = $region64
        $region63: #{bottleneck_pallas.1} parent=59 // pred_region
          %s1367 = ssub.s32 1024, 1024
          %1368 = vsyncadd %s1359, %s1367
          %s1369 = smul.addr %s24, 8
          %s1370 = smul.addr %s1369, 128
          %s1371 = scalar_lea.hbm %s10, %s1370
          %s1372 = sshll.u32 %s1362, 4
          %s1373 = int_to_ptr.vmem [resolvable:$true] %s1372
          %1378 = dma.vmem_to_hbm [thread:$0]  %s1373, 1024, %s1371, %s1359, 128, 128, 8
        $region64: #{bottleneck_pallas.1} parent=59 // pred_fallthru
          _
      $region60: #{bottleneck_pallas.1} parent=5 // pred_fallthru
        _
      %p1379 = scmp.le.s32.totalorder 2, %s19
      // Predicated region
      $region65: #{bottleneck_pallas.1} parent=5 // pred_check
        %p1380 = pneg %p1379
      $region66: #{bottleneck_pallas.1} parent=5 // pred_check_branch
        %1382 = sbr.rel (%p1380) target = $region68
      $region67: #{bottleneck_pallas.1} parent=5 // pred_region
        %s1383 = ssub.s32 %s19, 2
        // Predicated region
        $region69: #{bottleneck_pallas.1} parent=67 // pred_check
          %p1384 = pneg %p263
        $region70: #{bottleneck_pallas.1} parent=67 // pred_check_branch
          %1386 = sbr.rel (%p1384) target = $region72
        $region71: #{bottleneck_pallas.1} parent=67 // pred_region
          %s1387 = sand.u32 %s248, 1
          %s1388 = scalar_lea.sflag [#allocation4], %s1387
          %s1389 = sand.u32 %s248, 1
          %s1390 = smul.addr %s1389, 64
          %s1391 = scalar_lea.vmem [#allocation3], %s1390
          %1392 = dma.done %s1388, 1024
        $region72: #{bottleneck_pallas.1} parent=67 // pred_fallthru
          _
      $region68: #{bottleneck_pallas.1} parent=5 // pred_fallthru
        _
    $region6: #{bottleneck_pallas.1} parent=1 // loop_footer
      %s23 = sadd.s32 1, %s19
    $region7: #{bottleneck_pallas.1} parent=1 // loop_footer_branch
      %18 = sbr.rel target = $region3
    $region8: #{bottleneck_pallas.1} parent=1 // loop_exit
      _
    %1393 = vsyncpa [#allocation4], 1
    %s1394 = scalar_lea.sflag [#allocation4], 1
    %1395 = vsyncpa %s1394, 1

</llo_original>
